<compile_context>
chip_gen: v5e
topology: v5e:2x2
jax: 0.10.0
libtpu: 0.0.40
codegen_flags: <defaults>
</compile_context>

<pallas_src>
import jax
import jax.numpy as jnp
from jax.experimental import pallas as pl
from jax.experimental.pallas import tpu as pltpu


# ---------------------------------------------------------------------------
# LSTM cell step (x_proj already contains x @ W_ih + b_ih + b_hh)
# ---------------------------------------------------------------------------
def _lstm_step(x_proj, h, c, w_hh):
    gates = x_proj + jnp.dot(h, w_hh, preferred_element_type=jnp.float32)
    hid = h.shape[-1]
    # Activate the full (batch, 4H) vreg once, then slice gates out of the activated values.
    sig = jax.nn.sigmoid(gates)
    tgh = jnp.tanh(gates)
    i_g = sig[:, 0 * hid:1 * hid]
    f_g = sig[:, 1 * hid:2 * hid]
    g_g = tgh[:, 2 * hid:3 * hid]
    o_g = sig[:, 3 * hid:4 * hid]
    c_new = f_g * c + i_g * g_g
    h_new = o_g * jnp.tanh(c_new)
    return h_new, c_new


# ---------------------------------------------------------------------------
# Fused seq2seq kernel: full encoder recurrence + full decoder recurrence
# ---------------------------------------------------------------------------
def seq2seq_kernel(tf_ref,                         # SMEM (steps,) i32 teacher-forcing coins
                   x_enc_ref,                      # VMEM (src_len, batch, 4H) folded enc inputs
                   x_tf_ref,                       # VMEM (steps,  batch, 4H) folded TF dec inputs
                   enc_whh_ref, dec_whh_ref,       # VMEM (H, 4H)
                   dec_proj_ref,                   # VMEM (V_out, 4H) folded dec embedding table
                   fc_w_ref, fc_b_ref,             # VMEM (H, V_out), (1, V_out)
                   out_ref):                       # VMEM (trg_len, batch, V_out)
    src_len, batch, four_hid = x_enc_ref.shape
    steps = x_tf_ref.shape[0]
    hid = four_hid // 4
    out_dim = out_ref.shape[-1]

    # Hoist invariant weight loads out of both recurrences (loaded once from VMEM).
    enc_whh = enc_whh_ref[...]
    dec_whh = dec_whh_ref[...]
    dec_proj = dec_proj_ref[...]
    fc_w = fc_w_ref[...]
    fc_b = fc_b_ref[...]

    # ---------------- encoder recurrence (h/c carried in vregs) ----------------
    def enc_body(t, hc):
        h, c = hc
        return _lstm_step(x_enc_ref[t], h, c, enc_whh)

    zeros_hc = jnp.zeros((batch, hid), jnp.float32)
    h, c = jax.lax.fori_loop(0, src_len, enc_body, (zeros_hc, zeros_hc), unroll=True)

    # outputs[0] stays zero, matching the torch.zeros initialization in the reference.
    out_ref[0] = jnp.zeros((batch, out_dim), jnp.float32)

    # Hoisted iota for the argmax -> one-hot path (don't rebuild the broadcast per iteration).
    col = jax.lax.broadcasted_iota(jnp.int32, (batch, out_dim), 1).astype(jnp.float32)

    # ---------------- decoder recurrence ----------------
    def dec_body(i, carry):
        h_prev, c_prev, x_gen = carry
        # Decode step t = i + 1.  Step 1 always consumes trg[0]; later steps use trg[t-1] when
        # the coin at the previous step said teacher-force, else the folded embedding of the
        # greedy token.  Weight is exactly 0.0/1.0 and both operands are finite, so the
        # arithmetic blend is an exact select.
        take_tf = jnp.logical_or(i == 0, tf_ref[i] != 0).astype(jnp.float32)
        x_proj = take_tf * x_tf_ref[i] + (1.0 - take_tf) * x_gen

        h_new, c_new = _lstm_step(x_proj, h_prev, c_prev, dec_whh)

        logits = jnp.dot(h_new, fc_w, preferred_element_type=jnp.float32) + fc_b
        out_ref[i + 1] = logits   # VMEM store; HBM writeback happens once at kernel exit.

        # Greedy token: argmax (first max index) -> one-hot -> folded embedding row.
        # onehot @ (dec_emb @ W_ih + b) == dec_emb[top1] @ W_ih + b (one-hot rows sum to 1).
        # TODO(synk): for a realistic vocab, replace this with a direct dynamic row gather from
        # dec_proj_ref instead of a (batch, V) x (V, 4H) MXU op.
        row_max = jnp.max(logits, axis=1, keepdims=True)
        cand = jnp.where(logits == row_max, col, jnp.float32(out_dim))
        top1 = jnp.min(cand, axis=1, keepdims=True)          # first index achieving the max
        onehot = (col == top1).astype(jnp.float32)            # (batch, V_out)
        x_gen_new = jnp.dot(onehot, dec_proj, preferred_element_type=jnp.float32)
        return (h_new, c_new, x_gen_new)

    x_gen0 = jnp.zeros((batch, four_hid), jnp.float32)
    jax.lax.fori_loop(0, steps, dec_body, (h, c, x_gen0), unroll=True)


# ---------------------------------------------------------------------------
# Wrapper: single pallas_call, no grid (whole forward pass in one invocation)
# ---------------------------------------------------------------------------
def run_seq2seq(tf_i32, x_enc, x_tf, enc_w_hh_t, dec_w_hh_t, dec_proj, fc_w_t, fc_b, trg_len):
    _, batch, _ = x_tf.shape
    out_dim = fc_w_t.shape[1]
    in_specs = ([pl.BlockSpec(memory_space=pltpu.MemorySpace.SMEM)]          # tf coin flips
                + [pl.BlockSpec(memory_space=pltpu.MemorySpace.VMEM) for _ in range(7)])
    return pl.pallas_call(
        seq2seq_kernel,
        out_shape=jax.ShapeDtypeStruct((trg_len, batch, out_dim), jnp.float32),
        in_specs=in_specs,
        out_specs=pl.BlockSpec(memory_space=pltpu.MemorySpace.VMEM),
    )(tf_i32, x_enc, x_tf, enc_w_hh_t, dec_w_hh_t, dec_proj, fc_w_t, fc_b)


# ---------------------------------------------------------------------------
# Model (Seq2Seq.forward semantics)
# ---------------------------------------------------------------------------
def init_params(key, input_dim, output_dim, emb_dim, hid_dim):
    ks = jax.random.split(key, 10)
    s = hid_dim ** -0.5

    def u(k, shape, scale):
        return jax.random.uniform(k, shape, jnp.float32, -scale, scale)

    return dict(
        enc_emb=u(ks[0], (input_dim, emb_dim), 0.1),
        enc_w_ih_t=u(ks[1], (emb_dim, 4 * hid_dim), s),
        enc_w_hh_t=u(ks[2], (hid_dim, 4 * hid_dim), s),
        enc_b=u(ks[3], (1, 4 * hid_dim), s),          # b_ih + b_hh combined
        dec_emb=u(ks[4], (output_dim, emb_dim), 0.1),
        dec_w_ih_t=u(ks[5], (emb_dim, 4 * hid_dim), s),
        dec_w_hh_t=u(ks[6], (hid_dim, 4 * hid_dim), s),
        dec_b=u(ks[7], (1, 4 * hid_dim), s),
        fc_w_t=u(ks[8], (hid_dim, output_dim), s),
        fc_b=u(ks[9], (1, output_dim), s),
    )


def seq2seq_forward(params, src, trg, teacher_forcing_ratio=0.5, tf_key=None):
    """Replicates Seq2Seq.forward: encoder over src, then step-wise decoder with teacher
    forcing; outputs[0] stays zero, outputs[t] = decoder logits at step t."""
    # TODO(synk): dropout on embeddings omitted (eval-mode identity).
    src_len, batch = src.shape
    trg_len = trg.shape[0]

    # Fold (embedding @ W_ih + combined bias) once per vocab: one tiny param-prep matmul each,
    # so the recurrent kernel only does h @ W_hh per step.
    enc_proj = jnp.dot(params["enc_emb"], params["enc_w_ih_t"]) + params["enc_b"]   # (V_in, 4H)
    dec_proj = jnp.dot(params["dec_emb"], params["dec_w_ih_t"]) + params["dec_b"]   # (V_out, 4H)

    # Token -> folded-projection gathers: one-time glue off the recurrent critical path.
    # TODO(synk): could move in-kernel via SMEM token ids + dynamic row loads from the tables.
    x_enc = jnp.take(enc_proj, src, axis=0)                  # (src_len, batch, 4H)
    x_tf = jnp.take(dec_proj, trg[:trg_len - 1], axis=0)     # (trg_len-1, batch, 4H)

    # Teacher-forcing coin flips (python random.random() replaced by deterministic jax RNG);
    # index 0 is ignored in-kernel (first decode step always uses trg[0]).
    if tf_key is None:
        tf_key = jax.random.PRNGKey(1234)
    tf_draws = jax.random.uniform(tf_key, (trg_len,)) < teacher_forcing_ratio
    tf_i32 = tf_draws[:trg_len - 1].astype(jnp.int32)

    return run_seq2seq(tf_i32, x_enc, x_tf, params["enc_w_hh_t"], params["dec_w_hh_t"],
                       dec_proj, params["fc_w_t"], params["fc_b"], trg_len)


# ---------------------------------------------------------------------------
if __name__ == "__main__":
    INPUT_DIM = 20    # src vocab
    OUTPUT_DIM = 16   # trg vocab (decoder.output_dim)
    EMB_DIM = 32
    HID_DIM = 32
    BATCH = 2
    SRC_LEN = 7
    TRG_LEN = 8

    root = jax.random.PRNGKey(0)
    k_param, k_src, k_trg, k_tf = jax.random.split(root, 4)

    params = init_params(k_param, INPUT_DIM, OUTPUT_DIM, EMB_DIM, HID_DIM)
    src = jax.random.randint(k_src, (SRC_LEN, BATCH), 0, INPUT_DIM, dtype=jnp.int32)
    trg = jax.random.randint(k_trg, (TRG_LEN, BATCH), 0, OUTPUT_DIM, dtype=jnp.int32)

    outputs = seq2seq_forward(params, src, trg, teacher_forcing_ratio=0.5, tf_key=k_tf)
    outputs = jax.block_until_ready(outputs)

    assert outputs.shape == (TRG_LEN, BATCH, OUTPUT_DIM)
    assert bool(jnp.all(jnp.isfinite(outputs)))
    assert bool(jnp.all(outputs[0] == 0.0))
    print("KERNEL_OK")
</pallas_src>

<mosaic_0001>
module attributes {stable_mosaic.version = 11 : i64} {
  func.func @seq2seq_kernel(%arg0: memref<7xi32, #tpu.memory_space<smem>>, %arg1: memref<7x2x128xf32, #tpu.memory_space<vmem>>, %arg2: memref<7x2x128xf32, #tpu.memory_space<vmem>>, %arg3: memref<32x128xf32, #tpu.memory_space<vmem>>, %arg4: memref<32x128xf32, #tpu.memory_space<vmem>>, %arg5: memref<16x128xf32, #tpu.memory_space<vmem>>, %arg6: memref<32x16xf32, #tpu.memory_space<vmem>>, %arg7: memref<1x16xf32, #tpu.memory_space<vmem>>, %arg8: memref<8x2x16xf32, #tpu.memory_space<vmem>>) attributes {dimension_semantics = [], scalar_prefetch = 0 : i64, scratch_operands = 0 : i64, tpu.core_type = #tpu.core_type<tc>} {
    %c0 = arith.constant 0 : index
    %c0_0 = arith.constant 0 : index
    %0 = vector.load %arg3[%c0, %c0_0] : memref<32x128xf32, #tpu.memory_space<vmem>>, vector<32x128xf32>
    %c0_1 = arith.constant 0 : index
    %c0_2 = arith.constant 0 : index
    %1 = vector.load %arg4[%c0_1, %c0_2] : memref<32x128xf32, #tpu.memory_space<vmem>>, vector<32x128xf32>
    %c0_3 = arith.constant 0 : index
    %c0_4 = arith.constant 0 : index
    %2 = vector.load %arg5[%c0_3, %c0_4] : memref<16x128xf32, #tpu.memory_space<vmem>>, vector<16x128xf32>
    %c0_5 = arith.constant 0 : index
    %c0_6 = arith.constant 0 : index
    %3 = vector.load %arg6[%c0_5, %c0_6] : memref<32x16xf32, #tpu.memory_space<vmem>>, vector<32x16xf32>
    %c0_7 = arith.constant 0 : index
    %c0_8 = arith.constant 0 : index
    %4 = vector.load %arg7[%c0_7, %c0_8] : memref<1x16xf32, #tpu.memory_space<vmem>>, vector<1x16xf32>
    %cst = arith.constant 0.000000e+00 : f32
    %5 = vector.broadcast %cst : f32 to vector<2x32xf32>
    %c0_i32 = arith.constant 0 : i32
    %6 = arith.index_cast %c0_i32 : i32 to index
    %c0_9 = arith.constant 0 : index
    %c0_10 = arith.constant 0 : index
    %7 = vector.load %arg1[%6, %c0_9, %c0_10] : memref<7x2x128xf32, #tpu.memory_space<vmem>>, vector<1x2x128xf32>
    %8 = vector.shape_cast %7 : vector<1x2x128xf32> to vector<2x128xf32>
    %cst_11 = arith.constant dense<0.000000e+00> : vector<2x128xf32>
    %9 = tpu.matmul %5, %0, %cst_11 {dimension_numbers = #tpu.dot_dimension_numbers<[1], [0], [0], [1], [0, 0, 1, 1], [], []>} : vector<2x32xf32>, vector<32x128xf32>, vector<2x128xf32> -> vector<2x128xf32>
    %10 = arith.addf %8, %9 : vector<2x128xf32>
    %11 = arith.negf %10 : vector<2x128xf32>
    %12 = math.exp %11 : vector<2x128xf32>
    %cst_12 = arith.constant 1.000000e+00 : f32
    %13 = vector.broadcast %cst_12 : f32 to vector<2x128xf32>
    %14 = arith.addf %13, %12 : vector<2x128xf32>
    %15 = arith.divf %13, %14 : vector<2x128xf32>
    %16 = math.tanh %10 : vector<2x128xf32>
    %17 = vector.extract_strided_slice %15 {offsets = [0, 0], sizes = [2, 32], strides = [1, 1]} : vector<2x128xf32> to vector<2x32xf32>
    %18 = vector.extract_strided_slice %15 {offsets = [0, 32], sizes = [2, 32], strides = [1, 1]} : vector<2x128xf32> to vector<2x32xf32>
    %19 = vector.extract_strided_slice %16 {offsets = [0, 64], sizes = [2, 32], strides = [1, 1]} : vector<2x128xf32> to vector<2x32xf32>
    %20 = vector.extract_strided_slice %15 {offsets = [0, 96], sizes = [2, 32], strides = [1, 1]} : vector<2x128xf32> to vector<2x32xf32>
    %21 = arith.mulf %18, %5 : vector<2x32xf32>
    %22 = arith.mulf %17, %19 : vector<2x32xf32>
    %23 = arith.addf %21, %22 : vector<2x32xf32>
    %24 = math.tanh %23 : vector<2x32xf32>
    %25 = arith.mulf %20, %24 : vector<2x32xf32>
    %c1_i32 = arith.constant 1 : i32
    %26 = arith.index_cast %c1_i32 : i32 to index
    %c0_13 = arith.constant 0 : index
    %c0_14 = arith.constant 0 : index
    %27 = vector.load %arg1[%26, %c0_13, %c0_14] : memref<7x2x128xf32, #tpu.memory_space<vmem>>, vector<1x2x128xf32>
    %28 = vector.shape_cast %27 : vector<1x2x128xf32> to vector<2x128xf32>
    %cst_15 = arith.constant dense<0.000000e+00> : vector<2x128xf32>
    %29 = tpu.matmul %25, %0, %cst_15 {dimension_numbers = #tpu.dot_dimension_numbers<[1], [0], [0], [1], [0, 0, 1, 1], [], []>} : vector<2x32xf32>, vector<32x128xf32>, vector<2x128xf32> -> vector<2x128xf32>
    %30 = arith.addf %28, %29 : vector<2x128xf32>
    %31 = arith.negf %30 : vector<2x128xf32>
    %32 = math.exp %31 : vector<2x128xf32>
    %cst_16 = arith.constant 1.000000e+00 : f32
    %33 = vector.broadcast %cst_16 : f32 to vector<2x128xf32>
    %34 = arith.addf %33, %32 : vector<2x128xf32>
    %35 = arith.divf %33, %34 : vector<2x128xf32>
    %36 = math.tanh %30 : vector<2x128xf32>
    %37 = vector.extract_strided_slice %35 {offsets = [0, 0], sizes = [2, 32], strides = [1, 1]} : vector<2x128xf32> to vector<2x32xf32>
    %38 = vector.extract_strided_slice %35 {offsets = [0, 32], sizes = [2, 32], strides = [1, 1]} : vector<2x128xf32> to vector<2x32xf32>
    %39 = vector.extract_strided_slice %36 {offsets = [0, 64], sizes = [2, 32], strides = [1, 1]} : vector<2x128xf32> to vector<2x32xf32>
    %40 = vector.extract_strided_slice %35 {offsets = [0, 96], sizes = [2, 32], strides = [1, 1]} : vector<2x128xf32> to vector<2x32xf32>
    %41 = arith.mulf %38, %23 : vector<2x32xf32>
    %42 = arith.mulf %37, %39 : vector<2x32xf32>
    %43 = arith.addf %41, %42 : vector<2x32xf32>
    %44 = math.tanh %43 : vector<2x32xf32>
    %45 = arith.mulf %40, %44 : vector<2x32xf32>
    %c2_i32 = arith.constant 2 : i32
    %46 = arith.index_cast %c2_i32 : i32 to index
    %c0_17 = arith.constant 0 : index
    %c0_18 = arith.constant 0 : index
    %47 = vector.load %arg1[%46, %c0_17, %c0_18] : memref<7x2x128xf32, #tpu.memory_space<vmem>>, vector<1x2x128xf32>
    %48 = vector.shape_cast %47 : vector<1x2x128xf32> to vector<2x128xf32>
    %cst_19 = arith.constant dense<0.000000e+00> : vector<2x128xf32>
    %49 = tpu.matmul %45, %0, %cst_19 {dimension_numbers = #tpu.dot_dimension_numbers<[1], [0], [0], [1], [0, 0, 1, 1], [], []>} : vector<2x32xf32>, vector<32x128xf32>, vector<2x128xf32> -> vector<2x128xf32>
    %50 = arith.addf %48, %49 : vector<2x128xf32>
    %51 = arith.negf %50 : vector<2x128xf32>
    %52 = math.exp %51 : vector<2x128xf32>
    %cst_20 = arith.constant 1.000000e+00 : f32
    %53 = vector.broadcast %cst_20 : f32 to vector<2x128xf32>
    %54 = arith.addf %53, %52 : vector<2x128xf32>
    %55 = arith.divf %53, %54 : vector<2x128xf32>
    %56 = math.tanh %50 : vector<2x128xf32>
    %57 = vector.extract_strided_slice %55 {offsets = [0, 0], sizes = [2, 32], strides = [1, 1]} : vector<2x128xf32> to vector<2x32xf32>
    %58 = vector.extract_strided_slice %55 {offsets = [0, 32], sizes = [2, 32], strides = [1, 1]} : vector<2x128xf32> to vector<2x32xf32>
    %59 = vector.extract_strided_slice %56 {offsets = [0, 64], sizes = [2, 32], strides = [1, 1]} : vector<2x128xf32> to vector<2x32xf32>
    %60 = vector.extract_strided_slice %55 {offsets = [0, 96], sizes = [2, 32], strides = [1, 1]} : vector<2x128xf32> to vector<2x32xf32>
    %61 = arith.mulf %58, %43 : vector<2x32xf32>
    %62 = arith.mulf %57, %59 : vector<2x32xf32>
    %63 = arith.addf %61, %62 : vector<2x32xf32>
    %64 = math.tanh %63 : vector<2x32xf32>
    %65 = arith.mulf %60, %64 : vector<2x32xf32>
    %c3_i32 = arith.constant 3 : i32
    %66 = arith.index_cast %c3_i32 : i32 to index
    %c0_21 = arith.constant 0 : index
    %c0_22 = arith.constant 0 : index
    %67 = vector.load %arg1[%66, %c0_21, %c0_22] : memref<7x2x128xf32, #tpu.memory_space<vmem>>, vector<1x2x128xf32>
    %68 = vector.shape_cast %67 : vector<1x2x128xf32> to vector<2x128xf32>
    %cst_23 = arith.constant dense<0.000000e+00> : vector<2x128xf32>
    %69 = tpu.matmul %65, %0, %cst_23 {dimension_numbers = #tpu.dot_dimension_numbers<[1], [0], [0], [1], [0, 0, 1, 1], [], []>} : vector<2x32xf32>, vector<32x128xf32>, vector<2x128xf32> -> vector<2x128xf32>
    %70 = arith.addf %68, %69 : vector<2x128xf32>
    %71 = arith.negf %70 : vector<2x128xf32>
    %72 = math.exp %71 : vector<2x128xf32>
    %cst_24 = arith.constant 1.000000e+00 : f32
    %73 = vector.broadcast %cst_24 : f32 to vector<2x128xf32>
    %74 = arith.addf %73, %72 : vector<2x128xf32>
    %75 = arith.divf %73, %74 : vector<2x128xf32>
    %76 = math.tanh %70 : vector<2x128xf32>
    %77 = vector.extract_strided_slice %75 {offsets = [0, 0], sizes = [2, 32], strides = [1, 1]} : vector<2x128xf32> to vector<2x32xf32>
    %78 = vector.extract_strided_slice %75 {offsets = [0, 32], sizes = [2, 32], strides = [1, 1]} : vector<2x128xf32> to vector<2x32xf32>
    %79 = vector.extract_strided_slice %76 {offsets = [0, 64], sizes = [2, 32], strides = [1, 1]} : vector<2x128xf32> to vector<2x32xf32>
    %80 = vector.extract_strided_slice %75 {offsets = [0, 96], sizes = [2, 32], strides = [1, 1]} : vector<2x128xf32> to vector<2x32xf32>
    %81 = arith.mulf %78, %63 : vector<2x32xf32>
    %82 = arith.mulf %77, %79 : vector<2x32xf32>
    %83 = arith.addf %81, %82 : vector<2x32xf32>
    %84 = math.tanh %83 : vector<2x32xf32>
    %85 = arith.mulf %80, %84 : vector<2x32xf32>
    %c4_i32 = arith.constant 4 : i32
    %86 = arith.index_cast %c4_i32 : i32 to index
    %c0_25 = arith.constant 0 : index
    %c0_26 = arith.constant 0 : index
    %87 = vector.load %arg1[%86, %c0_25, %c0_26] : memref<7x2x128xf32, #tpu.memory_space<vmem>>, vector<1x2x128xf32>
    %88 = vector.shape_cast %87 : vector<1x2x128xf32> to vector<2x128xf32>
    %cst_27 = arith.constant dense<0.000000e+00> : vector<2x128xf32>
    %89 = tpu.matmul %85, %0, %cst_27 {dimension_numbers = #tpu.dot_dimension_numbers<[1], [0], [0], [1], [0, 0, 1, 1], [], []>} : vector<2x32xf32>, vector<32x128xf32>, vector<2x128xf32> -> vector<2x128xf32>
    %90 = arith.addf %88, %89 : vector<2x128xf32>
    %91 = arith.negf %90 : vector<2x128xf32>
    %92 = math.exp %91 : vector<2x128xf32>
    %cst_28 = arith.constant 1.000000e+00 : f32
    %93 = vector.broadcast %cst_28 : f32 to vector<2x128xf32>
    %94 = arith.addf %93, %92 : vector<2x128xf32>
    %95 = arith.divf %93, %94 : vector<2x128xf32>
    %96 = math.tanh %90 : vector<2x128xf32>
    %97 = vector.extract_strided_slice %95 {offsets = [0, 0], sizes = [2, 32], strides = [1, 1]} : vector<2x128xf32> to vector<2x32xf32>
    %98 = vector.extract_strided_slice %95 {offsets = [0, 32], sizes = [2, 32], strides = [1, 1]} : vector<2x128xf32> to vector<2x32xf32>
    %99 = vector.extract_strided_slice %96 {offsets = [0, 64], sizes = [2, 32], strides = [1, 1]} : vector<2x128xf32> to vector<2x32xf32>
    %100 = vector.extract_strided_slice %95 {offsets = [0, 96], sizes = [2, 32], strides = [1, 1]} : vector<2x128xf32> to vector<2x32xf32>
    %101 = arith.mulf %98, %83 : vector<2x32xf32>
    %102 = arith.mulf %97, %99 : vector<2x32xf32>
    %103 = arith.addf %101, %102 : vector<2x32xf32>
    %104 = math.tanh %103 : vector<2x32xf32>
    %105 = arith.mulf %100, %104 : vector<2x32xf32>
    %c5_i32 = arith.constant 5 : i32
    %106 = arith.index_cast %c5_i32 : i32 to index
    %c0_29 = arith.constant 0 : index
    %c0_30 = arith.constant 0 : index
    %107 = vector.load %arg1[%106, %c0_29, %c0_30] : memref<7x2x128xf32, #tpu.memory_space<vmem>>, vector<1x2x128xf32>
    %108 = vector.shape_cast %107 : vector<1x2x128xf32> to vector<2x128xf32>
    %cst_31 = arith.constant dense<0.000000e+00> : vector<2x128xf32>
    %109 = tpu.matmul %105, %0, %cst_31 {dimension_numbers = #tpu.dot_dimension_numbers<[1], [0], [0], [1], [0, 0, 1, 1], [], []>} : vector<2x32xf32>, vector<32x128xf32>, vector<2x128xf32> -> vector<2x128xf32>
    %110 = arith.addf %108, %109 : vector<2x128xf32>
    %111 = arith.negf %110 : vector<2x128xf32>
    %112 = math.exp %111 : vector<2x128xf32>
    %cst_32 = arith.constant 1.000000e+00 : f32
    %113 = vector.broadcast %cst_32 : f32 to vector<2x128xf32>
    %114 = arith.addf %113, %112 : vector<2x128xf32>
    %115 = arith.divf %113, %114 : vector<2x128xf32>
    %116 = math.tanh %110 : vector<2x128xf32>
    %117 = vector.extract_strided_slice %115 {offsets = [0, 0], sizes = [2, 32], strides = [1, 1]} : vector<2x128xf32> to vector<2x32xf32>
    %118 = vector.extract_strided_slice %115 {offsets = [0, 32], sizes = [2, 32], strides = [1, 1]} : vector<2x128xf32> to vector<2x32xf32>
    %119 = vector.extract_strided_slice %116 {offsets = [0, 64], sizes = [2, 32], strides = [1, 1]} : vector<2x128xf32> to vector<2x32xf32>
    %120 = vector.extract_strided_slice %115 {offsets = [0, 96], sizes = [2, 32], strides = [1, 1]} : vector<2x128xf32> to vector<2x32xf32>
    %121 = arith.mulf %118, %103 : vector<2x32xf32>
    %122 = arith.mulf %117, %119 : vector<2x32xf32>
    %123 = arith.addf %121, %122 : vector<2x32xf32>
    %124 = math.tanh %123 : vector<2x32xf32>
    %125 = arith.mulf %120, %124 : vector<2x32xf32>
    %c6_i32 = arith.constant 6 : i32
    %126 = arith.index_cast %c6_i32 : i32 to index
    %c0_33 = arith.constant 0 : index
    %c0_34 = arith.constant 0 : index
    %127 = vector.load %arg1[%126, %c0_33, %c0_34] : memref<7x2x128xf32, #tpu.memory_space<vmem>>, vector<1x2x128xf32>
    %128 = vector.shape_cast %127 : vector<1x2x128xf32> to vector<2x128xf32>
    %cst_35 = arith.constant dense<0.000000e+00> : vector<2x128xf32>
    %129 = tpu.matmul %125, %0, %cst_35 {dimension_numbers = #tpu.dot_dimension_numbers<[1], [0], [0], [1], [0, 0, 1, 1], [], []>} : vector<2x32xf32>, vector<32x128xf32>, vector<2x128xf32> -> vector<2x128xf32>
    %130 = arith.addf %128, %129 : vector<2x128xf32>
    %131 = arith.negf %130 : vector<2x128xf32>
    %132 = math.exp %131 : vector<2x128xf32>
    %cst_36 = arith.constant 1.000000e+00 : f32
    %133 = vector.broadcast %cst_36 : f32 to vector<2x128xf32>
    %134 = arith.addf %133, %132 : vector<2x128xf32>
    %135 = arith.divf %133, %134 : vector<2x128xf32>
    %136 = math.tanh %130 : vector<2x128xf32>
    %137 = vector.extract_strided_slice %135 {offsets = [0, 0], sizes = [2, 32], strides = [1, 1]} : vector<2x128xf32> to vector<2x32xf32>
    %138 = vector.extract_strided_slice %135 {offsets = [0, 32], sizes = [2, 32], strides = [1, 1]} : vector<2x128xf32> to vector<2x32xf32>
    %139 = vector.extract_strided_slice %136 {offsets = [0, 64], sizes = [2, 32], strides = [1, 1]} : vector<2x128xf32> to vector<2x32xf32>
    %140 = vector.extract_strided_slice %135 {offsets = [0, 96], sizes = [2, 32], strides = [1, 1]} : vector<2x128xf32> to vector<2x32xf32>
    %141 = arith.mulf %138, %123 : vector<2x32xf32>
    %142 = arith.mulf %137, %139 : vector<2x32xf32>
    %143 = arith.addf %141, %142 : vector<2x32xf32>
    %144 = math.tanh %143 : vector<2x32xf32>
    %145 = arith.mulf %140, %144 : vector<2x32xf32>
    %c7_i32 = arith.constant 7 : i32
    %cst_37 = arith.constant 0.000000e+00 : f32
    %146 = vector.broadcast %cst_37 : f32 to vector<2x16xf32>
    %c0_38 = arith.constant 0 : index
    %c0_39 = arith.constant 0 : index
    %c0_40 = arith.constant 0 : index
    %147 = vector.load %arg8[%c0_38, %c0_39, %c0_40] : memref<8x2x16xf32, #tpu.memory_space<vmem>>, vector<1x2x16xf32>
    %148 = vector.shape_cast %147 : vector<1x2x16xf32> to vector<2x16xf32>
    %149 = vector.shape_cast %146 : vector<2x16xf32> to vector<1x2x16xf32>
    tpu.vector_store %arg8[%c0_38, %c0_39, %c0_40], %149 {strides = array<i32>} : memref<8x2x16xf32, #tpu.memory_space<vmem>>, vector<1x2x16xf32>,
    %150 = tpu.iota {dimensions = array<i32: 1>} : vector<2x16xi32>
    %151 = arith.sitofp %150 : vector<2x16xi32> to vector<2x16xf32>
    %cst_41 = arith.constant 0.000000e+00 : f32
    %152 = vector.broadcast %cst_41 : f32 to vector<2x128xf32>
    %c0_i32_42 = arith.constant 0 : i32
    %c0_i32_43 = arith.constant 0 : i32
    %153 = arith.cmpi eq, %c0_i32_42, %c0_i32_43 : i32
    %154 = arith.index_cast %c0_i32_42 : i32 to index
    %155 = memref.load %arg0[%154] : memref<7xi32, #tpu.memory_space<smem>>
    %c0_i32_44 = arith.constant 0 : i32
    %156 = arith.cmpi ne, %155, %c0_i32_44 : i32
    %157 = arith.ori %153, %156 : i1
    %158 = arith.extui %157 : i1 to i32
    %159 = arith.sitofp %158 : i32 to f32
    %160 = arith.index_cast %c0_i32_42 : i32 to index
    %c0_45 = arith.constant 0 : index
    %c0_46 = arith.constant 0 : index
    %161 = vector.load %arg2[%160, %c0_45, %c0_46] : memref<7x2x128xf32, #tpu.memory_space<vmem>>, vector<1x2x128xf32>
    %162 = vector.shape_cast %161 : vector<1x2x128xf32> to vector<2x128xf32>
    %163 = vector.broadcast %159 : f32 to vector<2x128xf32>
    %164 = arith.mulf %163, %162 : vector<2x128xf32>
    %cst_47 = arith.constant 1.000000e+00 : f32
    %165 = arith.subf %cst_47, %159 : f32
    %166 = vector.broadcast %165 : f32 to vector<2x128xf32>
    %167 = arith.mulf %166, %152 : vector<2x128xf32>
    %168 = arith.addf %164, %167 : vector<2x128xf32>
    %cst_48 = arith.constant dense<0.000000e+00> : vector<2x128xf32>
    %169 = tpu.matmul %145, %1, %cst_48 {dimension_numbers = #tpu.dot_dimension_numbers<[1], [0], [0], [1], [0, 0, 1, 1], [], []>} : vector<2x32xf32>, vector<32x128xf32>, vector<2x128xf32> -> vector<2x128xf32>
    %170 = arith.addf %168, %169 : vector<2x128xf32>
    %171 = arith.negf %170 : vector<2x128xf32>
    %172 = math.exp %171 : vector<2x128xf32>
    %cst_49 = arith.constant 1.000000e+00 : f32
    %173 = vector.broadcast %cst_49 : f32 to vector<2x128xf32>
    %174 = arith.addf %173, %172 : vector<2x128xf32>
    %175 = arith.divf %173, %174 : vector<2x128xf32>
    %176 = math.tanh %170 : vector<2x128xf32>
    %177 = vector.extract_strided_slice %175 {offsets = [0, 0], sizes = [2, 32], strides = [1, 1]} : vector<2x128xf32> to vector<2x32xf32>
    %178 = vector.extract_strided_slice %175 {offsets = [0, 32], sizes = [2, 32], strides = [1, 1]} : vector<2x128xf32> to vector<2x32xf32>
    %179 = vector.extract_strided_slice %176 {offsets = [0, 64], sizes = [2, 32], strides = [1, 1]} : vector<2x128xf32> to vector<2x32xf32>
    %180 = vector.extract_strided_slice %175 {offsets = [0, 96], sizes = [2, 32], strides = [1, 1]} : vector<2x128xf32> to vector<2x32xf32>
    %181 = arith.mulf %178, %143 : vector<2x32xf32>
    %182 = arith.mulf %177, %179 : vector<2x32xf32>
    %183 = arith.addf %181, %182 : vector<2x32xf32>
    %184 = math.tanh %183 : vector<2x32xf32>
    %185 = arith.mulf %180, %184 : vector<2x32xf32>
    %cst_50 = arith.constant dense<0.000000e+00> : vector<2x16xf32>
    %186 = tpu.matmul %185, %3, %cst_50 {dimension_numbers = #tpu.dot_dimension_numbers<[1], [0], [0], [1], [0, 0, 1, 1], [], []>} : vector<2x32xf32>, vector<32x16xf32>, vector<2x16xf32> -> vector<2x16xf32>
    %187 = vector.broadcast %4 : vector<1x16xf32> to vector<2x16xf32>
    %188 = arith.addf %186, %187 : vector<2x16xf32>
    %c1_i32_51 = arith.constant 1 : i32
    %189 = arith.addi %c0_i32_42, %c1_i32_51 : i32
    %190 = arith.index_cast %189 : i32 to index
    %c0_52 = arith.constant 0 : index
    %c0_53 = arith.constant 0 : index
    %191 = vector.load %arg8[%190, %c0_52, %c0_53] : memref<8x2x16xf32, #tpu.memory_space<vmem>>, vector<1x2x16xf32>
    %192 = vector.shape_cast %191 : vector<1x2x16xf32> to vector<2x16xf32>
    %193 = vector.shape_cast %188 : vector<2x16xf32> to vector<1x2x16xf32>
    tpu.vector_store %arg8[%190, %c0_52, %c0_53], %193 {strides = array<i32>} : memref<8x2x16xf32, #tpu.memory_space<vmem>>, vector<1x2x16xf32>,
    %cst_54 = arith.constant dense<0xFF800000> : vector<2xf32>
    %194 = vector.multi_reduction <maximumf>, %188, %cst_54 [1] : vector<2x16xf32> to vector<2xf32>
    %195 = vector.shape_cast %194 : vector<2xf32> to vector<2x1xf32>
    %196 = vector.broadcast %195 : vector<2x1xf32> to vector<2x16xf32>
    %197 = arith.cmpf oeq, %188, %196 : vector<2x16xf32>
    %cst_55 = arith.constant 1.600000e+01 : f32
    %198 = vector.broadcast %cst_55 : f32 to vector<2x16xf32>
    %199 = arith.select %197, %151, %198 : vector<2x16xi1>, vector<2x16xf32>
    %cst_56 = arith.constant dense<0x7F800000> : vector<2xf32>
    %200 = vector.multi_reduction <minimumf>, %199, %cst_56 [1] : vector<2x16xf32> to vector<2xf32>
    %201 = vector.shape_cast %200 : vector<2xf32> to vector<2x1xf32>
    %202 = vector.broadcast %201 : vector<2x1xf32> to vector<2x16xf32>
    %203 = arith.cmpf oeq, %151, %202 : vector<2x16xf32>
    %204 = arith.extui %203 : vector<2x16xi1> to vector<2x16xi32>
    %205 = arith.sitofp %204 : vector<2x16xi32> to vector<2x16xf32>
    %cst_57 = arith.constant dense<0.000000e+00> : vector<2x128xf32>
    %206 = tpu.matmul %205, %2, %cst_57 {dimension_numbers = #tpu.dot_dimension_numbers<[1], [0], [0], [1], [0, 0, 1, 1], [], []>} : vector<2x16xf32>, vector<16x128xf32>, vector<2x128xf32> -> vector<2x128xf32>
    %c1_i32_58 = arith.constant 1 : i32
    %c0_i32_59 = arith.constant 0 : i32
    %207 = arith.cmpi eq, %c1_i32_58, %c0_i32_59 : i32
    %208 = arith.index_cast %c1_i32_58 : i32 to index
    %209 = memref.load %arg0[%208] : memref<7xi32, #tpu.memory_space<smem>>
    %c0_i32_60 = arith.constant 0 : i32
    %210 = arith.cmpi ne, %209, %c0_i32_60 : i32
    %211 = arith.ori %207, %210 : i1
    %212 = arith.extui %211 : i1 to i32
    %213 = arith.sitofp %212 : i32 to f32
    %214 = arith.index_cast %c1_i32_58 : i32 to index
    %c0_61 = arith.constant 0 : index
    %c0_62 = arith.constant 0 : index
    %215 = vector.load %arg2[%214, %c0_61, %c0_62] : memref<7x2x128xf32, #tpu.memory_space<vmem>>, vector<1x2x128xf32>
    %216 = vector.shape_cast %215 : vector<1x2x128xf32> to vector<2x128xf32>
    %217 = vector.broadcast %213 : f32 to vector<2x128xf32>
    %218 = arith.mulf %217, %216 : vector<2x128xf32>
    %cst_63 = arith.constant 1.000000e+00 : f32
    %219 = arith.subf %cst_63, %213 : f32
    %220 = vector.broadcast %219 : f32 to vector<2x128xf32>
    %221 = arith.mulf %220, %206 : vector<2x128xf32>
    %222 = arith.addf %218, %221 : vector<2x128xf32>
    %cst_64 = arith.constant dense<0.000000e+00> : vector<2x128xf32>
    %223 = tpu.matmul %185, %1, %cst_64 {dimension_numbers = #tpu.dot_dimension_numbers<[1], [0], [0], [1], [0, 0, 1, 1], [], []>} : vector<2x32xf32>, vector<32x128xf32>, vector<2x128xf32> -> vector<2x128xf32>
    %224 = arith.addf %222, %223 : vector<2x128xf32>
    %225 = arith.negf %224 : vector<2x128xf32>
    %226 = math.exp %225 : vector<2x128xf32>
    %cst_65 = arith.constant 1.000000e+00 : f32
    %227 = vector.broadcast %cst_65 : f32 to vector<2x128xf32>
    %228 = arith.addf %227, %226 : vector<2x128xf32>
    %229 = arith.divf %227, %228 : vector<2x128xf32>
    %230 = math.tanh %224 : vector<2x128xf32>
    %231 = vector.extract_strided_slice %229 {offsets = [0, 0], sizes = [2, 32], strides = [1, 1]} : vector<2x128xf32> to vector<2x32xf32>
    %232 = vector.extract_strided_slice %229 {offsets = [0, 32], sizes = [2, 32], strides = [1, 1]} : vector<2x128xf32> to vector<2x32xf32>
    %233 = vector.extract_strided_slice %230 {offsets = [0, 64], sizes = [2, 32], strides = [1, 1]} : vector<2x128xf32> to vector<2x32xf32>
    %234 = vector.extract_strided_slice %229 {offsets = [0, 96], sizes = [2, 32], strides = [1, 1]} : vector<2x128xf32> to vector<2x32xf32>
    %235 = arith.mulf %232, %183 : vector<2x32xf32>
    %236 = arith.mulf %231, %233 : vector<2x32xf32>
    %237 = arith.addf %235, %236 : vector<2x32xf32>
    %238 = math.tanh %237 : vector<2x32xf32>
    %239 = arith.mulf %234, %238 : vector<2x32xf32>
    %cst_66 = arith.constant dense<0.000000e+00> : vector<2x16xf32>
    %240 = tpu.matmul %239, %3, %cst_66 {dimension_numbers = #tpu.dot_dimension_numbers<[1], [0], [0], [1], [0, 0, 1, 1], [], []>} : vector<2x32xf32>, vector<32x16xf32>, vector<2x16xf32> -> vector<2x16xf32>
    %241 = vector.broadcast %4 : vector<1x16xf32> to vector<2x16xf32>
    %242 = arith.addf %240, %241 : vector<2x16xf32>
    %c1_i32_67 = arith.constant 1 : i32
    %243 = arith.addi %c1_i32_58, %c1_i32_67 : i32
    %244 = arith.index_cast %243 : i32 to index
    %c0_68 = arith.constant 0 : index
    %c0_69 = arith.constant 0 : index
    %245 = vector.load %arg8[%244, %c0_68, %c0_69] : memref<8x2x16xf32, #tpu.memory_space<vmem>>, vector<1x2x16xf32>
    %246 = vector.shape_cast %245 : vector<1x2x16xf32> to vector<2x16xf32>
    %247 = vector.shape_cast %242 : vector<2x16xf32> to vector<1x2x16xf32>
    tpu.vector_store %arg8[%244, %c0_68, %c0_69], %247 {strides = array<i32>} : memref<8x2x16xf32, #tpu.memory_space<vmem>>, vector<1x2x16xf32>,
    %cst_70 = arith.constant dense<0xFF800000> : vector<2xf32>
    %248 = vector.multi_reduction <maximumf>, %242, %cst_70 [1] : vector<2x16xf32> to vector<2xf32>
    %249 = vector.shape_cast %248 : vector<2xf32> to vector<2x1xf32>
    %250 = vector.broadcast %249 : vector<2x1xf32> to vector<2x16xf32>
    %251 = arith.cmpf oeq, %242, %250 : vector<2x16xf32>
    %cst_71 = arith.constant 1.600000e+01 : f32
    %252 = vector.broadcast %cst_71 : f32 to vector<2x16xf32>
    %253 = arith.select %251, %151, %252 : vector<2x16xi1>, vector<2x16xf32>
    %cst_72 = arith.constant dense<0x7F800000> : vector<2xf32>
    %254 = vector.multi_reduction <minimumf>, %253, %cst_72 [1] : vector<2x16xf32> to vector<2xf32>
    %255 = vector.shape_cast %254 : vector<2xf32> to vector<2x1xf32>
    %256 = vector.broadcast %255 : vector<2x1xf32> to vector<2x16xf32>
    %257 = arith.cmpf oeq, %151, %256 : vector<2x16xf32>
    %258 = arith.extui %257 : vector<2x16xi1> to vector<2x16xi32>
    %259 = arith.sitofp %258 : vector<2x16xi32> to vector<2x16xf32>
    %cst_73 = arith.constant dense<0.000000e+00> : vector<2x128xf32>
    %260 = tpu.matmul %259, %2, %cst_73 {dimension_numbers = #tpu.dot_dimension_numbers<[1], [0], [0], [1], [0, 0, 1, 1], [], []>} : vector<2x16xf32>, vector<16x128xf32>, vector<2x128xf32> -> vector<2x128xf32>
    %c2_i32_74 = arith.constant 2 : i32
    %c0_i32_75 = arith.constant 0 : i32
    %261 = arith.cmpi eq, %c2_i32_74, %c0_i32_75 : i32
    %262 = arith.index_cast %c2_i32_74 : i32 to index
    %263 = memref.load %arg0[%262] : memref<7xi32, #tpu.memory_space<smem>>
    %c0_i32_76 = arith.constant 0 : i32
    %264 = arith.cmpi ne, %263, %c0_i32_76 : i32
    %265 = arith.ori %261, %264 : i1
    %266 = arith.extui %265 : i1 to i32
    %267 = arith.sitofp %266 : i32 to f32
    %268 = arith.index_cast %c2_i32_74 : i32 to index
    %c0_77 = arith.constant 0 : index
    %c0_78 = arith.constant 0 : index
    %269 = vector.load %arg2[%268, %c0_77, %c0_78] : memref<7x2x128xf32, #tpu.memory_space<vmem>>, vector<1x2x128xf32>
    %270 = vector.shape_cast %269 : vector<1x2x128xf32> to vector<2x128xf32>
    %271 = vector.broadcast %267 : f32 to vector<2x128xf32>
    %272 = arith.mulf %271, %270 : vector<2x128xf32>
    %cst_79 = arith.constant 1.000000e+00 : f32
    %273 = arith.subf %cst_79, %267 : f32
    %274 = vector.broadcast %273 : f32 to vector<2x128xf32>
    %275 = arith.mulf %274, %260 : vector<2x128xf32>
    %276 = arith.addf %272, %275 : vector<2x128xf32>
    %cst_80 = arith.constant dense<0.000000e+00> : vector<2x128xf32>
    %277 = tpu.matmul %239, %1, %cst_80 {dimension_numbers = #tpu.dot_dimension_numbers<[1], [0], [0], [1], [0, 0, 1, 1], [], []>} : vector<2x32xf32>, vector<32x128xf32>, vector<2x128xf32> -> vector<2x128xf32>
    %278 = arith.addf %276, %277 : vector<2x128xf32>
    %279 = arith.negf %278 : vector<2x128xf32>
    %280 = math.exp %279 : vector<2x128xf32>
    %cst_81 = arith.constant 1.000000e+00 : f32
    %281 = vector.broadcast %cst_81 : f32 to vector<2x128xf32>
    %282 = arith.addf %281, %280 : vector<2x128xf32>
    %283 = arith.divf %281, %282 : vector<2x128xf32>
    %284 = math.tanh %278 : vector<2x128xf32>
    %285 = vector.extract_strided_slice %283 {offsets = [0, 0], sizes = [2, 32], strides = [1, 1]} : vector<2x128xf32> to vector<2x32xf32>
    %286 = vector.extract_strided_slice %283 {offsets = [0, 32], sizes = [2, 32], strides = [1, 1]} : vector<2x128xf32> to vector<2x32xf32>
    %287 = vector.extract_strided_slice %284 {offsets = [0, 64], sizes = [2, 32], strides = [1, 1]} : vector<2x128xf32> to vector<2x32xf32>
    %288 = vector.extract_strided_slice %283 {offsets = [0, 96], sizes = [2, 32], strides = [1, 1]} : vector<2x128xf32> to vector<2x32xf32>
    %289 = arith.mulf %286, %237 : vector<2x32xf32>
    %290 = arith.mulf %285, %287 : vector<2x32xf32>
    %291 = arith.addf %289, %290 : vector<2x32xf32>
    %292 = math.tanh %291 : vector<2x32xf32>
    %293 = arith.mulf %288, %292 : vector<2x32xf32>
    %cst_82 = arith.constant dense<0.000000e+00> : vector<2x16xf32>
    %294 = tpu.matmul %293, %3, %cst_82 {dimension_numbers = #tpu.dot_dimension_numbers<[1], [0], [0], [1], [0, 0, 1, 1], [], []>} : vector<2x32xf32>, vector<32x16xf32>, vector<2x16xf32> -> vector<2x16xf32>
    %295 = vector.broadcast %4 : vector<1x16xf32> to vector<2x16xf32>
    %296 = arith.addf %294, %295 : vector<2x16xf32>
    %c1_i32_83 = arith.constant 1 : i32
    %297 = arith.addi %c2_i32_74, %c1_i32_83 : i32
    %298 = arith.index_cast %297 : i32 to index
    %c0_84 = arith.constant 0 : index
    %c0_85 = arith.constant 0 : index
    %299 = vector.load %arg8[%298, %c0_84, %c0_85] : memref<8x2x16xf32, #tpu.memory_space<vmem>>, vector<1x2x16xf32>
    %300 = vector.shape_cast %299 : vector<1x2x16xf32> to vector<2x16xf32>
    %301 = vector.shape_cast %296 : vector<2x16xf32> to vector<1x2x16xf32>
    tpu.vector_store %arg8[%298, %c0_84, %c0_85], %301 {strides = array<i32>} : memref<8x2x16xf32, #tpu.memory_space<vmem>>, vector<1x2x16xf32>,
    %cst_86 = arith.constant dense<0xFF800000> : vector<2xf32>
    %302 = vector.multi_reduction <maximumf>, %296, %cst_86 [1] : vector<2x16xf32> to vector<2xf32>
    %303 = vector.shape_cast %302 : vector<2xf32> to vector<2x1xf32>
    %304 = vector.broadcast %303 : vector<2x1xf32> to vector<2x16xf32>
    %305 = arith.cmpf oeq, %296, %304 : vector<2x16xf32>
    %cst_87 = arith.constant 1.600000e+01 : f32
    %306 = vector.broadcast %cst_87 : f32 to vector<2x16xf32>
    %307 = arith.select %305, %151, %306 : vector<2x16xi1>, vector<2x16xf32>
    %cst_88 = arith.constant dense<0x7F800000> : vector<2xf32>
    %308 = vector.multi_reduction <minimumf>, %307, %cst_88 [1] : vector<2x16xf32> to vector<2xf32>
    %309 = vector.shape_cast %308 : vector<2xf32> to vector<2x1xf32>
    %310 = vector.broadcast %309 : vector<2x1xf32> to vector<2x16xf32>
    %311 = arith.cmpf oeq, %151, %310 : vector<2x16xf32>
    %312 = arith.extui %311 : vector<2x16xi1> to vector<2x16xi32>
    %313 = arith.sitofp %312 : vector<2x16xi32> to vector<2x16xf32>
    %cst_89 = arith.constant dense<0.000000e+00> : vector<2x128xf32>
    %314 = tpu.matmul %313, %2, %cst_89 {dimension_numbers = #tpu.dot_dimension_numbers<[1], [0], [0], [1], [0, 0, 1, 1], [], []>} : vector<2x16xf32>, vector<16x128xf32>, vector<2x128xf32> -> vector<2x128xf32>
    %c3_i32_90 = arith.constant 3 : i32
    %c0_i32_91 = arith.constant 0 : i32
    %315 = arith.cmpi eq, %c3_i32_90, %c0_i32_91 : i32
    %316 = arith.index_cast %c3_i32_90 : i32 to index
    %317 = memref.load %arg0[%316] : memref<7xi32, #tpu.memory_space<smem>>
    %c0_i32_92 = arith.constant 0 : i32
    %318 = arith.cmpi ne, %317, %c0_i32_92 : i32
    %319 = arith.ori %315, %318 : i1
    %320 = arith.extui %319 : i1 to i32
    %321 = arith.sitofp %320 : i32 to f32
    %322 = arith.index_cast %c3_i32_90 : i32 to index
    %c0_93 = arith.constant 0 : index
    %c0_94 = arith.constant 0 : index
    %323 = vector.load %arg2[%322, %c0_93, %c0_94] : memref<7x2x128xf32, #tpu.memory_space<vmem>>, vector<1x2x128xf32>
    %324 = vector.shape_cast %323 : vector<1x2x128xf32> to vector<2x128xf32>
    %325 = vector.broadcast %321 : f32 to vector<2x128xf32>
    %326 = arith.mulf %325, %324 : vector<2x128xf32>
    %cst_95 = arith.constant 1.000000e+00 : f32
    %327 = arith.subf %cst_95, %321 : f32
    %328 = vector.broadcast %327 : f32 to vector<2x128xf32>
    %329 = arith.mulf %328, %314 : vector<2x128xf32>
    %330 = arith.addf %326, %329 : vector<2x128xf32>
    %cst_96 = arith.constant dense<0.000000e+00> : vector<2x128xf32>
    %331 = tpu.matmul %293, %1, %cst_96 {dimension_numbers = #tpu.dot_dimension_numbers<[1], [0], [0], [1], [0, 0, 1, 1], [], []>} : vector<2x32xf32>, vector<32x128xf32>, vector<2x128xf32> -> vector<2x128xf32>
    %332 = arith.addf %330, %331 : vector<2x128xf32>
    %333 = arith.negf %332 : vector<2x128xf32>
    %334 = math.exp %333 : vector<2x128xf32>
    %cst_97 = arith.constant 1.000000e+00 : f32
    %335 = vector.broadcast %cst_97 : f32 to vector<2x128xf32>
    %336 = arith.addf %335, %334 : vector<2x128xf32>
    %337 = arith.divf %335, %336 : vector<2x128xf32>
    %338 = math.tanh %332 : vector<2x128xf32>
    %339 = vector.extract_strided_slice %337 {offsets = [0, 0], sizes = [2, 32], strides = [1, 1]} : vector<2x128xf32> to vector<2x32xf32>
    %340 = vector.extract_strided_slice %337 {offsets = [0, 32], sizes = [2, 32], strides = [1, 1]} : vector<2x128xf32> to vector<2x32xf32>
    %341 = vector.extract_strided_slice %338 {offsets = [0, 64], sizes = [2, 32], strides = [1, 1]} : vector<2x128xf32> to vector<2x32xf32>
    %342 = vector.extract_strided_slice %337 {offsets = [0, 96], sizes = [2, 32], strides = [1, 1]} : vector<2x128xf32> to vector<2x32xf32>
    %343 = arith.mulf %340, %291 : vector<2x32xf32>
    %344 = arith.mulf %339, %341 : vector<2x32xf32>
    %345 = arith.addf %343, %344 : vector<2x32xf32>
    %346 = math.tanh %345 : vector<2x32xf32>
    %347 = arith.mulf %342, %346 : vector<2x32xf32>
    %cst_98 = arith.constant dense<0.000000e+00> : vector<2x16xf32>
    %348 = tpu.matmul %347, %3, %cst_98 {dimension_numbers = #tpu.dot_dimension_numbers<[1], [0], [0], [1], [0, 0, 1, 1], [], []>} : vector<2x32xf32>, vector<32x16xf32>, vector<2x16xf32> -> vector<2x16xf32>
    %349 = vector.broadcast %4 : vector<1x16xf32> to vector<2x16xf32>
    %350 = arith.addf %348, %349 : vector<2x16xf32>
    %c1_i32_99 = arith.constant 1 : i32
    %351 = arith.addi %c3_i32_90, %c1_i32_99 : i32
    %352 = arith.index_cast %351 : i32 to index
    %c0_100 = arith.constant 0 : index
    %c0_101 = arith.constant 0 : index
    %353 = vector.load %arg8[%352, %c0_100, %c0_101] : memref<8x2x16xf32, #tpu.memory_space<vmem>>, vector<1x2x16xf32>
    %354 = vector.shape_cast %353 : vector<1x2x16xf32> to vector<2x16xf32>
    %355 = vector.shape_cast %350 : vector<2x16xf32> to vector<1x2x16xf32>
    tpu.vector_store %arg8[%352, %c0_100, %c0_101], %355 {strides = array<i32>} : memref<8x2x16xf32, #tpu.memory_space<vmem>>, vector<1x2x16xf32>,
    %cst_102 = arith.constant dense<0xFF800000> : vector<2xf32>
    %356 = vector.multi_reduction <maximumf>, %350, %cst_102 [1] : vector<2x16xf32> to vector<2xf32>
    %357 = vector.shape_cast %356 : vector<2xf32> to vector<2x1xf32>
    %358 = vector.broadcast %357 : vector<2x1xf32> to vector<2x16xf32>
    %359 = arith.cmpf oeq, %350, %358 : vector<2x16xf32>
    %cst_103 = arith.constant 1.600000e+01 : f32
    %360 = vector.broadcast %cst_103 : f32 to vector<2x16xf32>
    %361 = arith.select %359, %151, %360 : vector<2x16xi1>, vector<2x16xf32>
    %cst_104 = arith.constant dense<0x7F800000> : vector<2xf32>
    %362 = vector.multi_reduction <minimumf>, %361, %cst_104 [1] : vector<2x16xf32> to vector<2xf32>
    %363 = vector.shape_cast %362 : vector<2xf32> to vector<2x1xf32>
    %364 = vector.broadcast %363 : vector<2x1xf32> to vector<2x16xf32>
    %365 = arith.cmpf oeq, %151, %364 : vector<2x16xf32>
    %366 = arith.extui %365 : vector<2x16xi1> to vector<2x16xi32>
    %367 = arith.sitofp %366 : vector<2x16xi32> to vector<2x16xf32>
    %cst_105 = arith.constant dense<0.000000e+00> : vector<2x128xf32>
    %368 = tpu.matmul %367, %2, %cst_105 {dimension_numbers = #tpu.dot_dimension_numbers<[1], [0], [0], [1], [0, 0, 1, 1], [], []>} : vector<2x16xf32>, vector<16x128xf32>, vector<2x128xf32> -> vector<2x128xf32>
    %c4_i32_106 = arith.constant 4 : i32
    %c0_i32_107 = arith.constant 0 : i32
    %369 = arith.cmpi eq, %c4_i32_106, %c0_i32_107 : i32
    %370 = arith.index_cast %c4_i32_106 : i32 to index
    %371 = memref.load %arg0[%370] : memref<7xi32, #tpu.memory_space<smem>>
    %c0_i32_108 = arith.constant 0 : i32
    %372 = arith.cmpi ne, %371, %c0_i32_108 : i32
    %373 = arith.ori %369, %372 : i1
    %374 = arith.extui %373 : i1 to i32
    %375 = arith.sitofp %374 : i32 to f32
    %376 = arith.index_cast %c4_i32_106 : i32 to index
    %c0_109 = arith.constant 0 : index
    %c0_110 = arith.constant 0 : index
    %377 = vector.load %arg2[%376, %c0_109, %c0_110] : memref<7x2x128xf32, #tpu.memory_space<vmem>>, vector<1x2x128xf32>
    %378 = vector.shape_cast %377 : vector<1x2x128xf32> to vector<2x128xf32>
    %379 = vector.broadcast %375 : f32 to vector<2x128xf32>
    %380 = arith.mulf %379, %378 : vector<2x128xf32>
    %cst_111 = arith.constant 1.000000e+00 : f32
    %381 = arith.subf %cst_111, %375 : f32
    %382 = vector.broadcast %381 : f32 to vector<2x128xf32>
    %383 = arith.mulf %382, %368 : vector<2x128xf32>
    %384 = arith.addf %380, %383 : vector<2x128xf32>
    %cst_112 = arith.constant dense<0.000000e+00> : vector<2x128xf32>
    %385 = tpu.matmul %347, %1, %cst_112 {dimension_numbers = #tpu.dot_dimension_numbers<[1], [0], [0], [1], [0, 0, 1, 1], [], []>} : vector<2x32xf32>, vector<32x128xf32>, vector<2x128xf32> -> vector<2x128xf32>
    %386 = arith.addf %384, %385 : vector<2x128xf32>
    %387 = arith.negf %386 : vector<2x128xf32>
    %388 = math.exp %387 : vector<2x128xf32>
    %cst_113 = arith.constant 1.000000e+00 : f32
    %389 = vector.broadcast %cst_113 : f32 to vector<2x128xf32>
    %390 = arith.addf %389, %388 : vector<2x128xf32>
    %391 = arith.divf %389, %390 : vector<2x128xf32>
    %392 = math.tanh %386 : vector<2x128xf32>
    %393 = vector.extract_strided_slice %391 {offsets = [0, 0], sizes = [2, 32], strides = [1, 1]} : vector<2x128xf32> to vector<2x32xf32>
    %394 = vector.extract_strided_slice %391 {offsets = [0, 32], sizes = [2, 32], strides = [1, 1]} : vector<2x128xf32> to vector<2x32xf32>
    %395 = vector.extract_strided_slice %392 {offsets = [0, 64], sizes = [2, 32], strides = [1, 1]} : vector<2x128xf32> to vector<2x32xf32>
    %396 = vector.extract_strided_slice %391 {offsets = [0, 96], sizes = [2, 32], strides = [1, 1]} : vector<2x128xf32> to vector<2x32xf32>
    %397 = arith.mulf %394, %345 : vector<2x32xf32>
    %398 = arith.mulf %393, %395 : vector<2x32xf32>
    %399 = arith.addf %397, %398 : vector<2x32xf32>
    %400 = math.tanh %399 : vector<2x32xf32>
    %401 = arith.mulf %396, %400 : vector<2x32xf32>
    %cst_114 = arith.constant dense<0.000000e+00> : vector<2x16xf32>
    %402 = tpu.matmul %401, %3, %cst_114 {dimension_numbers = #tpu.dot_dimension_numbers<[1], [0], [0], [1], [0, 0, 1, 1], [], []>} : vector<2x32xf32>, vector<32x16xf32>, vector<2x16xf32> -> vector<2x16xf32>
    %403 = vector.broadcast %4 : vector<1x16xf32> to vector<2x16xf32>
    %404 = arith.addf %402, %403 : vector<2x16xf32>
    %c1_i32_115 = arith.constant 1 : i32
    %405 = arith.addi %c4_i32_106, %c1_i32_115 : i32
    %406 = arith.index_cast %405 : i32 to index
    %c0_116 = arith.constant 0 : index
    %c0_117 = arith.constant 0 : index
    %407 = vector.load %arg8[%406, %c0_116, %c0_117] : memref<8x2x16xf32, #tpu.memory_space<vmem>>, vector<1x2x16xf32>
    %408 = vector.shape_cast %407 : vector<1x2x16xf32> to vector<2x16xf32>
    %409 = vector.shape_cast %404 : vector<2x16xf32> to vector<1x2x16xf32>
    tpu.vector_store %arg8[%406, %c0_116, %c0_117], %409 {strides = array<i32>} : memref<8x2x16xf32, #tpu.memory_space<vmem>>, vector<1x2x16xf32>,
    %cst_118 = arith.constant dense<0xFF800000> : vector<2xf32>
    %410 = vector.multi_reduction <maximumf>, %404, %cst_118 [1] : vector<2x16xf32> to vector<2xf32>
    %411 = vector.shape_cast %410 : vector<2xf32> to vector<2x1xf32>
    %412 = vector.broadcast %411 : vector<2x1xf32> to vector<2x16xf32>
    %413 = arith.cmpf oeq, %404, %412 : vector<2x16xf32>
    %cst_119 = arith.constant 1.600000e+01 : f32
    %414 = vector.broadcast %cst_119 : f32 to vector<2x16xf32>
    %415 = arith.select %413, %151, %414 : vector<2x16xi1>, vector<2x16xf32>
    %cst_120 = arith.constant dense<0x7F800000> : vector<2xf32>
    %416 = vector.multi_reduction <minimumf>, %415, %cst_120 [1] : vector<2x16xf32> to vector<2xf32>
    %417 = vector.shape_cast %416 : vector<2xf32> to vector<2x1xf32>
    %418 = vector.broadcast %417 : vector<2x1xf32> to vector<2x16xf32>
    %419 = arith.cmpf oeq, %151, %418 : vector<2x16xf32>
    %420 = arith.extui %419 : vector<2x16xi1> to vector<2x16xi32>
    %421 = arith.sitofp %420 : vector<2x16xi32> to vector<2x16xf32>
    %cst_121 = arith.constant dense<0.000000e+00> : vector<2x128xf32>
    %422 = tpu.matmul %421, %2, %cst_121 {dimension_numbers = #tpu.dot_dimension_numbers<[1], [0], [0], [1], [0, 0, 1, 1], [], []>} : vector<2x16xf32>, vector<16x128xf32>, vector<2x128xf32> -> vector<2x128xf32>
    %c5_i32_122 = arith.constant 5 : i32
    %c0_i32_123 = arith.constant 0 : i32
    %423 = arith.cmpi eq, %c5_i32_122, %c0_i32_123 : i32
    %424 = arith.index_cast %c5_i32_122 : i32 to index
    %425 = memref.load %arg0[%424] : memref<7xi32, #tpu.memory_space<smem>>
    %c0_i32_124 = arith.constant 0 : i32
    %426 = arith.cmpi ne, %425, %c0_i32_124 : i32
    %427 = arith.ori %423, %426 : i1
    %428 = arith.extui %427 : i1 to i32
    %429 = arith.sitofp %428 : i32 to f32
    %430 = arith.index_cast %c5_i32_122 : i32 to index
    %c0_125 = arith.constant 0 : index
    %c0_126 = arith.constant 0 : index
    %431 = vector.load %arg2[%430, %c0_125, %c0_126] : memref<7x2x128xf32, #tpu.memory_space<vmem>>, vector<1x2x128xf32>
    %432 = vector.shape_cast %431 : vector<1x2x128xf32> to vector<2x128xf32>
    %433 = vector.broadcast %429 : f32 to vector<2x128xf32>
    %434 = arith.mulf %433, %432 : vector<2x128xf32>
    %cst_127 = arith.constant 1.000000e+00 : f32
    %435 = arith.subf %cst_127, %429 : f32
    %436 = vector.broadcast %435 : f32 to vector<2x128xf32>
    %437 = arith.mulf %436, %422 : vector<2x128xf32>
    %438 = arith.addf %434, %437 : vector<2x128xf32>
    %cst_128 = arith.constant dense<0.000000e+00> : vector<2x128xf32>
    %439 = tpu.matmul %401, %1, %cst_128 {dimension_numbers = #tpu.dot_dimension_numbers<[1], [0], [0], [1], [0, 0, 1, 1], [], []>} : vector<2x32xf32>, vector<32x128xf32>, vector<2x128xf32> -> vector<2x128xf32>
    %440 = arith.addf %438, %439 : vector<2x128xf32>
    %441 = arith.negf %440 : vector<2x128xf32>
    %442 = math.exp %441 : vector<2x128xf32>
    %cst_129 = arith.constant 1.000000e+00 : f32
    %443 = vector.broadcast %cst_129 : f32 to vector<2x128xf32>
    %444 = arith.addf %443, %442 : vector<2x128xf32>
    %445 = arith.divf %443, %444 : vector<2x128xf32>
    %446 = math.tanh %440 : vector<2x128xf32>
    %447 = vector.extract_strided_slice %445 {offsets = [0, 0], sizes = [2, 32], strides = [1, 1]} : vector<2x128xf32> to vector<2x32xf32>
    %448 = vector.extract_strided_slice %445 {offsets = [0, 32], sizes = [2, 32], strides = [1, 1]} : vector<2x128xf32> to vector<2x32xf32>
    %449 = vector.extract_strided_slice %446 {offsets = [0, 64], sizes = [2, 32], strides = [1, 1]} : vector<2x128xf32> to vector<2x32xf32>
    %450 = vector.extract_strided_slice %445 {offsets = [0, 96], sizes = [2, 32], strides = [1, 1]} : vector<2x128xf32> to vector<2x32xf32>
    %451 = arith.mulf %448, %399 : vector<2x32xf32>
    %452 = arith.mulf %447, %449 : vector<2x32xf32>
    %453 = arith.addf %451, %452 : vector<2x32xf32>
    %454 = math.tanh %453 : vector<2x32xf32>
    %455 = arith.mulf %450, %454 : vector<2x32xf32>
    %cst_130 = arith.constant dense<0.000000e+00> : vector<2x16xf32>
    %456 = tpu.matmul %455, %3, %cst_130 {dimension_numbers = #tpu.dot_dimension_numbers<[1], [0], [0], [1], [0, 0, 1, 1], [], []>} : vector<2x32xf32>, vector<32x16xf32>, vector<2x16xf32> -> vector<2x16xf32>
    %457 = vector.broadcast %4 : vector<1x16xf32> to vector<2x16xf32>
    %458 = arith.addf %456, %457 : vector<2x16xf32>
    %c1_i32_131 = arith.constant 1 : i32
    %459 = arith.addi %c5_i32_122, %c1_i32_131 : i32
    %460 = arith.index_cast %459 : i32 to index
    %c0_132 = arith.constant 0 : index
    %c0_133 = arith.constant 0 : index
    %461 = vector.load %arg8[%460, %c0_132, %c0_133] : memref<8x2x16xf32, #tpu.memory_space<vmem>>, vector<1x2x16xf32>
    %462 = vector.shape_cast %461 : vector<1x2x16xf32> to vector<2x16xf32>
    %463 = vector.shape_cast %458 : vector<2x16xf32> to vector<1x2x16xf32>
    tpu.vector_store %arg8[%460, %c0_132, %c0_133], %463 {strides = array<i32>} : memref<8x2x16xf32, #tpu.memory_space<vmem>>, vector<1x2x16xf32>,
    %cst_134 = arith.constant dense<0xFF800000> : vector<2xf32>
    %464 = vector.multi_reduction <maximumf>, %458, %cst_134 [1] : vector<2x16xf32> to vector<2xf32>
    %465 = vector.shape_cast %464 : vector<2xf32> to vector<2x1xf32>
    %466 = vector.broadcast %465 : vector<2x1xf32> to vector<2x16xf32>
    %467 = arith.cmpf oeq, %458, %466 : vector<2x16xf32>
    %cst_135 = arith.constant 1.600000e+01 : f32
    %468 = vector.broadcast %cst_135 : f32 to vector<2x16xf32>
    %469 = arith.select %467, %151, %468 : vector<2x16xi1>, vector<2x16xf32>
    %cst_136 = arith.constant dense<0x7F800000> : vector<2xf32>
    %470 = vector.multi_reduction <minimumf>, %469, %cst_136 [1] : vector<2x16xf32> to vector<2xf32>
    %471 = vector.shape_cast %470 : vector<2xf32> to vector<2x1xf32>
    %472 = vector.broadcast %471 : vector<2x1xf32> to vector<2x16xf32>
    %473 = arith.cmpf oeq, %151, %472 : vector<2x16xf32>
    %474 = arith.extui %473 : vector<2x16xi1> to vector<2x16xi32>
    %475 = arith.sitofp %474 : vector<2x16xi32> to vector<2x16xf32>
    %cst_137 = arith.constant dense<0.000000e+00> : vector<2x128xf32>
    %476 = tpu.matmul %475, %2, %cst_137 {dimension_numbers = #tpu.dot_dimension_numbers<[1], [0], [0], [1], [0, 0, 1, 1], [], []>} : vector<2x16xf32>, vector<16x128xf32>, vector<2x128xf32> -> vector<2x128xf32>
    %c6_i32_138 = arith.constant 6 : i32
    %c0_i32_139 = arith.constant 0 : i32
    %477 = arith.cmpi eq, %c6_i32_138, %c0_i32_139 : i32
    %478 = arith.index_cast %c6_i32_138 : i32 to index
    %479 = memref.load %arg0[%478] : memref<7xi32, #tpu.memory_space<smem>>
    %c0_i32_140 = arith.constant 0 : i32
    %480 = arith.cmpi ne, %479, %c0_i32_140 : i32
    %481 = arith.ori %477, %480 : i1
    %482 = arith.extui %481 : i1 to i32
    %483 = arith.sitofp %482 : i32 to f32
    %484 = arith.index_cast %c6_i32_138 : i32 to index
    %c0_141 = arith.constant 0 : index
    %c0_142 = arith.constant 0 : index
    %485 = vector.load %arg2[%484, %c0_141, %c0_142] : memref<7x2x128xf32, #tpu.memory_space<vmem>>, vector<1x2x128xf32>
    %486 = vector.shape_cast %485 : vector<1x2x128xf32> to vector<2x128xf32>
    %487 = vector.broadcast %483 : f32 to vector<2x128xf32>
    %488 = arith.mulf %487, %486 : vector<2x128xf32>
    %cst_143 = arith.constant 1.000000e+00 : f32
    %489 = arith.subf %cst_143, %483 : f32
    %490 = vector.broadcast %489 : f32 to vector<2x128xf32>
    %491 = arith.mulf %490, %476 : vector<2x128xf32>
    %492 = arith.addf %488, %491 : vector<2x128xf32>
    %cst_144 = arith.constant dense<0.000000e+00> : vector<2x128xf32>
    %493 = tpu.matmul %455, %1, %cst_144 {dimension_numbers = #tpu.dot_dimension_numbers<[1], [0], [0], [1], [0, 0, 1, 1], [], []>} : vector<2x32xf32>, vector<32x128xf32>, vector<2x128xf32> -> vector<2x128xf32>
    %494 = arith.addf %492, %493 : vector<2x128xf32>
    %495 = arith.negf %494 : vector<2x128xf32>
    %496 = math.exp %495 : vector<2x128xf32>
    %cst_145 = arith.constant 1.000000e+00 : f32
    %497 = vector.broadcast %cst_145 : f32 to vector<2x128xf32>
    %498 = arith.addf %497, %496 : vector<2x128xf32>
    %499 = arith.divf %497, %498 : vector<2x128xf32>
    %500 = math.tanh %494 : vector<2x128xf32>
    %501 = vector.extract_strided_slice %499 {offsets = [0, 0], sizes = [2, 32], strides = [1, 1]} : vector<2x128xf32> to vector<2x32xf32>
    %502 = vector.extract_strided_slice %499 {offsets = [0, 32], sizes = [2, 32], strides = [1, 1]} : vector<2x128xf32> to vector<2x32xf32>
    %503 = vector.extract_strided_slice %500 {offsets = [0, 64], sizes = [2, 32], strides = [1, 1]} : vector<2x128xf32> to vector<2x32xf32>
    %504 = vector.extract_strided_slice %499 {offsets = [0, 96], sizes = [2, 32], strides = [1, 1]} : vector<2x128xf32> to vector<2x32xf32>
    %505 = arith.mulf %502, %453 : vector<2x32xf32>
    %506 = arith.mulf %501, %503 : vector<2x32xf32>
    %507 = arith.addf %505, %506 : vector<2x32xf32>
    %508 = math.tanh %507 : vector<2x32xf32>
    %509 = arith.mulf %504, %508 : vector<2x32xf32>
    %cst_146 = arith.constant dense<0.000000e+00> : vector<2x16xf32>
    %510 = tpu.matmul %509, %3, %cst_146 {dimension_numbers = #tpu.dot_dimension_numbers<[1], [0], [0], [1], [0, 0, 1, 1], [], []>} : vector<2x32xf32>, vector<32x16xf32>, vector<2x16xf32> -> vector<2x16xf32>
    %511 = vector.broadcast %4 : vector<1x16xf32> to vector<2x16xf32>
    %512 = arith.addf %510, %511 : vector<2x16xf32>
    %c1_i32_147 = arith.constant 1 : i32
    %513 = arith.addi %c6_i32_138, %c1_i32_147 : i32
    %514 = arith.index_cast %513 : i32 to index
    %c0_148 = arith.constant 0 : index
    %c0_149 = arith.constant 0 : index
    %515 = vector.load %arg8[%514, %c0_148, %c0_149] : memref<8x2x16xf32, #tpu.memory_space<vmem>>, vector<1x2x16xf32>
    %516 = vector.shape_cast %515 : vector<1x2x16xf32> to vector<2x16xf32>
    %517 = vector.shape_cast %512 : vector<2x16xf32> to vector<1x2x16xf32>
    tpu.vector_store %arg8[%514, %c0_148, %c0_149], %517 {strides = array<i32>} : memref<8x2x16xf32, #tpu.memory_space<vmem>>, vector<1x2x16xf32>,
    %cst_150 = arith.constant dense<0xFF800000> : vector<2xf32>
    %518 = vector.multi_reduction <maximumf>, %512, %cst_150 [1] : vector<2x16xf32> to vector<2xf32>
    %519 = vector.shape_cast %518 : vector<2xf32> to vector<2x1xf32>
    %520 = vector.broadcast %519 : vector<2x1xf32> to vector<2x16xf32>
    %521 = arith.cmpf oeq, %512, %520 : vector<2x16xf32>
    %cst_151 = arith.constant 1.600000e+01 : f32
    %522 = vector.broadcast %cst_151 : f32 to vector<2x16xf32>
    %523 = arith.select %521, %151, %522 : vector<2x16xi1>, vector<2x16xf32>
    %cst_152 = arith.constant dense<0x7F800000> : vector<2xf32>
    %524 = vector.multi_reduction <minimumf>, %523, %cst_152 [1] : vector<2x16xf32> to vector<2xf32>
    %525 = vector.shape_cast %524 : vector<2xf32> to vector<2x1xf32>
    %526 = vector.broadcast %525 : vector<2x1xf32> to vector<2x16xf32>
    %527 = arith.cmpf oeq, %151, %526 : vector<2x16xf32>
    %528 = arith.extui %527 : vector<2x16xi1> to vector<2x16xi32>
    %529 = arith.sitofp %528 : vector<2x16xi32> to vector<2x16xf32>
    %cst_153 = arith.constant dense<0.000000e+00> : vector<2x128xf32>
    %530 = tpu.matmul %529, %2, %cst_153 {dimension_numbers = #tpu.dot_dimension_numbers<[1], [0], [0], [1], [0, 0, 1, 1], [], []>} : vector<2x16xf32>, vector<16x128xf32>, vector<2x128xf32> -> vector<2x128xf32>
    %c7_i32_154 = arith.constant 7 : i32
    return
  }
}

</mosaic_0001>

<llo_original>
// kernel: tpu_custom_call.1
$region0: #{tpu_custom_call.1}
  #allocation0 [shape = 'u32[]', space=smem, size = 0x4, offset = 0x4, fixed_abs, tag = 'smem constant byte address 0x4 - core index']
  #allocation1 [shape = 'u32[72,128]{1,0:T(1,128)}', space=vmem, size = 0x9000, scoped, tag = 'internal scratch']
  %s0 = inlined_call_operand.vmem [shape: s32[7], index: 0, kind: input, shape index: {}]
  %s1 = inlined_call_operand.hbm [shape: f32[7,2,128], index: 1, kind: input, shape index: {}]
  %s2 = inlined_call_operand.hbm [shape: f32[7,2,128], index: 2, kind: input, shape index: {}]
  %s3 = inlined_call_operand.vmem [shape: f32[32,128], index: 3, kind: input, shape index: {}]
  %s4 = inlined_call_operand.hbm [shape: f32[32,128], index: 4, kind: input, shape index: {}]
  %s5 = inlined_call_operand.vmem [shape: f32[16,128], index: 5, kind: input, shape index: {}]
  %s6 = inlined_call_operand.vmem [shape: f32[32,16], index: 6, kind: input, shape index: {}]
  %s7 = inlined_call_operand.vmem [shape: f32[1,16], index: 7, kind: input, shape index: {}]
  %s8 = inlined_call_operand.hbm [shape: f32[8,2,16], index: 8, kind: output, shape index: {}]
  %s9 = sld [smem:[#allocation0]]
  $region58: #{tpu_custom_call.1} parent=0
    _
  %s11 = ssub.s32 1, %s9
  %s12 = scalar_select 0, %s11, %s9
  $region1: #{tpu_custom_call.1} parent=0
    #allocation2 [shape = 'u8[512]{0}', space=smem, size = 0x200, scoped, tag = 'input window, operand 0, single buffered']
    #allocation3 [shape = 's32[1]{0}', space=sflag, size = 0x4, scoped, tag = 'scoped memory for tpu_custom_call.1']
    #allocation4 [shape = 's32[1]{0}', space=sflag, size = 0x4, scoped, tag = 'scoped memory for tpu_custom_call.1']
    #allocation5 [shape = 's32[1]{0}', space=sflag, size = 0x4, scoped, tag = 'scoped memory for tpu_custom_call.1']
    #allocation6 [shape = 'u8[7168]{0}', space=vmem, size = 0x1c00, scoped, tag = 'input window, operand 1, single buffered']
    #allocation7 [shape = 'u8[7168]{0}', space=vmem, size = 0x1c00, scoped, tag = 'input window, operand 2, single buffered']
    #allocation8 [shape = 's32[1]{0}', space=sflag, size = 0x4, scoped, tag = 'scoped memory for tpu_custom_call.1']
    #allocation9 [shape = 'u8[16384]{0}', space=vmem, size = 0x4000, scoped, tag = 'input window, operand 4, single buffered']
    #allocation10 [shape = 'u8[8192]{0}', space=vmem, size = 0x2000, scoped, tag = 'output window, operand 0, single buffered']
    %13 = vsyncpa [#allocation5], 0
    %14 = vsyncpa [#allocation3], 0
    %15 = vsyncpa [#allocation8], 0
    %16 = vsyncpa [#allocation4], 0
    // Predicated region
    $region2: #{tpu_custom_call.1} parent=1 // pred_check
      _
    $region3: #{tpu_custom_call.1} parent=1 // pred_check_branch
      %18 = sbr.rel (0) target = $region5
    $region4: #{tpu_custom_call.1} parent=1 // pred_region
      %20 = vsyncadd [#allocation5], 0
      %s22 = sshll.u32 %s0, 4
      %s23 = int_to_ptr.vmem [resolvable:$true] %s22
      %25 = dma.vmem_to_smem %s23, 16, [#allocation2], [#allocation5]
    $region5: #{tpu_custom_call.1} parent=1 // pred_fallthru
      _
    // Predicated region
    $region6: #{tpu_custom_call.1} parent=1 // pred_check
      _
    $region7: #{tpu_custom_call.1} parent=1 // pred_check_branch
      %27 = sbr.rel (0) target = $region9
    $region8: #{tpu_custom_call.1} parent=1 // pred_region
      %29 = vsyncadd [#allocation3], 0
      %s30 = sshll.u32 %s1, 4
      %s31 = int_to_ptr.hbm [resolvable:$true] %s30
      %s32 = sshll.u32 [#allocation6], 4
      %s33 = int_to_ptr.vmem [resolvable:$true] %s32
      %38 = dma.hbm_to_vmem [thread:$0]  %s31, 224, %s33, [#allocation3], 32, 32, 2
    $region9: #{tpu_custom_call.1} parent=1 // pred_fallthru
      _
    // Predicated region
    $region10: #{tpu_custom_call.1} parent=1 // pred_check
      _
    $region11: #{tpu_custom_call.1} parent=1 // pred_check_branch
      %40 = sbr.rel (0) target = $region13
    $region12: #{tpu_custom_call.1} parent=1 // pred_region
      %42 = vsyncadd [#allocation8], 0
      %s43 = sshll.u32 %s2, 4
      %s44 = int_to_ptr.hbm [resolvable:$true] %s43
      %s45 = sshll.u32 [#allocation7], 4
      %s46 = int_to_ptr.vmem [resolvable:$true] %s45
      %51 = dma.hbm_to_vmem [thread:$0]  %s44, 224, %s46, [#allocation8], 32, 32, 2
    $region13: #{tpu_custom_call.1} parent=1 // pred_fallthru
      _
    // Predicated region
    $region14: #{tpu_custom_call.1} parent=1 // pred_check
      _
    $region15: #{tpu_custom_call.1} parent=1 // pred_check_branch
      %53 = sbr.rel (0) target = $region17
    $region16: #{tpu_custom_call.1} parent=1 // pred_region
      _
    $region17: #{tpu_custom_call.1} parent=1 // pred_fallthru
      _
    // Predicated region
    $region18: #{tpu_custom_call.1} parent=1 // pred_check
      _
    $region19: #{tpu_custom_call.1} parent=1 // pred_check_branch
      %55 = sbr.rel (0) target = $region21
    $region20: #{tpu_custom_call.1} parent=1 // pred_region
      %57 = vsyncadd [#allocation8], 0
      %s58 = sshll.u32 %s4, 4
      %s59 = int_to_ptr.hbm [resolvable:$true] %s58
      %s60 = sshll.u32 [#allocation9], 4
      %s61 = int_to_ptr.vmem [resolvable:$true] %s60
      %66 = dma.hbm_to_vmem [thread:$0]  %s59, 512, %s61, [#allocation8], 128, 128, 8
    $region21: #{tpu_custom_call.1} parent=1 // pred_fallthru
      _
    // Predicated region
    $region22: #{tpu_custom_call.1} parent=1 // pred_check
      _
    $region23: #{tpu_custom_call.1} parent=1 // pred_check_branch
      %68 = sbr.rel (0) target = $region25
    $region24: #{tpu_custom_call.1} parent=1 // pred_region
      _
    $region25: #{tpu_custom_call.1} parent=1 // pred_fallthru
      _
    // Predicated region
    $region26: #{tpu_custom_call.1} parent=1 // pred_check
      _
    $region27: #{tpu_custom_call.1} parent=1 // pred_check_branch
      %70 = sbr.rel (0) target = $region29
    $region28: #{tpu_custom_call.1} parent=1 // pred_region
      _
    $region29: #{tpu_custom_call.1} parent=1 // pred_fallthru
      _
    // Predicated region
    $region30: #{tpu_custom_call.1} parent=1 // pred_check
      _
    $region31: #{tpu_custom_call.1} parent=1 // pred_check_branch
      %72 = sbr.rel (0) target = $region33
    $region32: #{tpu_custom_call.1} parent=1 // pred_region
      _
    $region33: #{tpu_custom_call.1} parent=1 // pred_fallthru
      _
    // Predicated region
    $region34: #{tpu_custom_call.1} parent=1 // pred_check
      _
    $region35: #{tpu_custom_call.1} parent=1 // pred_check_branch
      %74 = sbr.rel (0) target = $region37
    $region36: #{tpu_custom_call.1} parent=1 // pred_region
      %76 = dma.done [#allocation5], 16
    $region37: #{tpu_custom_call.1} parent=1 // pred_fallthru
      _
    // Predicated region
    $region38: #{tpu_custom_call.1} parent=1 // pred_check
      _
    $region39: #{tpu_custom_call.1} parent=1 // pred_check_branch
      %78 = sbr.rel (0) target = $region41
    $region40: #{tpu_custom_call.1} parent=1 // pred_region
      %80 = dma.done [#allocation3], 224
    $region41: #{tpu_custom_call.1} parent=1 // pred_fallthru
      _
    // Predicated region
    $region42: #{tpu_custom_call.1} parent=1 // pred_check
      _
    $region43: #{tpu_custom_call.1} parent=1 // pred_check_branch
      %82 = sbr.rel (0) target = $region45
    $region44: #{tpu_custom_call.1} parent=1 // pred_region
      %84 = dma.done [#allocation8], 224
    $region45: #{tpu_custom_call.1} parent=1 // pred_fallthru
      _
    // Predicated region
    $region46: #{tpu_custom_call.1} parent=1 // pred_check
      _
    $region47: #{tpu_custom_call.1} parent=1 // pred_check_branch
      %86 = sbr.rel (0) target = $region49
    $region48: #{tpu_custom_call.1} parent=1 // pred_region
      %88 = dma.done [#allocation8], 512
    $region49: #{tpu_custom_call.1} parent=1 // pred_fallthru
      _
    %89 = sfence
    %v90 = vld [vmem:[%s3] sm:$0xff]
    %v91 = vld [vmem:[%s3 + $0x8] sm:$0xff]
    %v92 = vld [vmem:[%s3 + $0x10] sm:$0xff]
    %v93 = vld [vmem:[%s3 + $0x18] sm:$0xff]
    %v94 = vld [vmem:[#allocation9] sm:$0xff]
    %v95 = vld [vmem:[#allocation9 + $0x8] sm:$0xff]
    %v96 = vld [vmem:[#allocation9 + $0x10] sm:$0xff]
    %v97 = vld [vmem:[#allocation9 + $0x18] sm:$0xff]
    %v98 = vld [vmem:[%s5] sm:$0xff]
    %v99 = vld [vmem:[%s5 + $0x8] sm:$0xff]
    %v100 = vld [vmem:[%s6] sm:$0xff]
    %v101 = vld [vmem:[%s6 + $0x8] sm:$0xff]
    %v102 = vld [vmem:[%s6 + $0x10] sm:$0xff]
    %v103 = vld [vmem:[%s6 + $0x18] sm:$0xff]
    %v104 = vld [vmem:[%s7] sm:$0x1]
    %v105 = vld [vmem:[#allocation6] sm:$0x3]
    %vm106 = vcmask 261120
    %v108 = vsel %vm106, 0.0, 0
    %110 = vmatpush.msra.mxu0 0.0
    %111 = vmatpush.msra.mxu0 0.0
    %112 = vmatpush.msra.mxu0 0.0
    %113 = vmatpush.msra.mxu0 0.0
    %114 = vmatpush.msra.mxu0 0.0
    %115 = vmatpush.msra.mxu0 0.0
    %116 = vmatpush.msra.mxu0 0.0
    %117 = vmatpush.msra.mxu0 0.0
    %118 = vmatpush.msra.mxu0 0.0
    %119 = vmatpush.msra.mxu0 0.0
    %120 = vmatpush.msra.mxu0 0.0
    %121 = vmatpush.msra.mxu0 0.0
    %122 = vmatpush.msra.mxu0 %v93
    %123 = vmatpush.msra.mxu0 %v92
    %124 = vmatpush.msra.mxu0 %v91
    %125 = vmatpush.msra.mxu0 %v90
    %126 = vmatmul.f32.gmra.mxu0 %v108
    %v127 = vpop.f32.mrf.mxu0
    %v128 = vadd.f32 0.0, %v127
    %129 = vdwg.mxu0
    %v130 = vadd.f32 %v105, %v128
    %v131 = vxor.u32 %v130, 2147483648
    %v132 = vmul.f32 %v131, 1.442695
    %v133 = vpow.pop %v132
    %v134 = vadd.f32 %v133, 1.0
    %v135 = vrcp.pop %v134
    %v136 = vmul.f32 %v134, %v135
    %v137 = vsub.f32 1.0, %v136
    %v138 = vmul.f32 %v135, %v137
    %v139 = vadd.f32 %v135, %v138
    %vm140 = vweird.f32 %v134
    %vm141 = vweird.f32 %v135
    %vm142 = vmor %vm140, %vm141
    %v143 = vsel %vm142, %v135, %v139
    %v144 = vand.u32 2147483647, %v134
    %vm145 = vcmp.eq.f32.partialorder %v144, 8.507059e+37
    %v146 = vand.u32 %v134, 2147483648
    %v147 = vor.u32 1.1754944e-38, %v146
    %v148 = vsel %vm145, %v147, %v143
    %v149 = vmul.f32 1.0, %v148
    %v150 = vtanh.pop %v130
    %v151 = vmul.f32 %v149, 0.0
    %153 = vrot.lane.b32.xlu0 %v150, 64
    %v154 = vpop.permute.xlu0 %153
    %v156 = vmul.f32 %v149, %v154
    %158 = vrot.lane.b32.xlu0 %v156, 32
    %v159 = vpop.permute.xlu0 %158
    %v161 = vadd.f32 %v151, %v159
    %v162 = vtanh.pop %v161
    %164 = vrot.lane.b32.xlu0 %v162, 64
    %v165 = vpop.permute.xlu0 %164
    %v167 = vmul.f32 %v149, %v165
    %s168 = scalar_lea.vmem [#allocation6], 2
    %v169 = vld [vmem:[%s168] sm:$0x3]
    %171 = vrot.lane.b32.xlu0 %v167, 32
    %v172 = vpop.permute.xlu0 %171
    %v173 = vsel %vm106, %v172, 0
    %175 = vmatpush.msra.mxu0 0.0
    %176 = vmatpush.msra.mxu0 0.0
    %177 = vmatpush.msra.mxu0 0.0
    %178 = vmatpush.msra.mxu0 0.0
    %179 = vmatpush.msra.mxu0 0.0
    %180 = vmatpush.msra.mxu0 0.0
    %181 = vmatpush.msra.mxu0 0.0
    %182 = vmatpush.msra.mxu0 0.0
    %183 = vmatpush.msra.mxu0 0.0
    %184 = vmatpush.msra.mxu0 0.0
    %185 = vmatpush.msra.mxu0 0.0
    %186 = vmatpush.msra.mxu0 0.0
    %187 = vmatpush.msra.mxu0 %v93
    %188 = vmatpush.msra.mxu0 %v92
    %189 = vmatpush.msra.mxu0 %v91
    %190 = vmatpush.msra.mxu0 %v90
    %191 = vmatmul.f32.gmra.mxu0 %v173
    %v192 = vpop.f32.mrf.mxu0
    %v193 = vadd.f32 0.0, %v192
    %194 = vdwg.mxu0
    %v195 = vadd.f32 %v169, %v193
    %v196 = vxor.u32 %v195, 2147483648
    %v197 = vmul.f32 %v196, 1.442695
    %v198 = vpow.pop %v197
    %v199 = vadd.f32 %v198, 1.0
    %v200 = vrcp.pop %v199
    %v201 = vmul.f32 %v199, %v200
    %v202 = vsub.f32 1.0, %v201
    %v203 = vmul.f32 %v200, %v202
    %v204 = vadd.f32 %v200, %v203
    %vm205 = vweird.f32 %v199
    %vm206 = vweird.f32 %v200
    %vm207 = vmor %vm205, %vm206
    %v208 = vsel %vm207, %v200, %v204
    %v209 = vand.u32 2147483647, %v199
    %vm210 = vcmp.eq.f32.partialorder %v209, 8.507059e+37
    %v211 = vand.u32 %v199, 2147483648
    %v212 = vor.u32 1.1754944e-38, %v211
    %v213 = vsel %vm210, %v212, %v208
    %v214 = vmul.f32 1.0, %v213
    %v215 = vtanh.pop %v195
    %v216 = vmul.f32 %v214, %v161
    %218 = vrot.lane.b32.xlu0 %v215, 64
    %v219 = vpop.permute.xlu0 %218
    %v221 = vmul.f32 %v214, %v219
    %223 = vrot.lane.b32.xlu0 %v221, 32
    %v224 = vpop.permute.xlu0 %223
    %v226 = vadd.f32 %v216, %v224
    %v227 = vtanh.pop %v226
    %229 = vrot.lane.b32.xlu0 %v227, 64
    %v230 = vpop.permute.xlu0 %229
    %v232 = vmul.f32 %v214, %v230
    %s233 = scalar_lea.vmem [#allocation6], 4
    %v234 = vld [vmem:[%s233] sm:$0x3]
    %236 = vrot.lane.b32.xlu0 %v232, 32
    %v237 = vpop.permute.xlu0 %236
    %v238 = vsel %vm106, %v237, 0
    %240 = vmatpush.msra.mxu0 0.0
    %241 = vmatpush.msra.mxu0 0.0
    %242 = vmatpush.msra.mxu0 0.0
    %243 = vmatpush.msra.mxu0 0.0
    %244 = vmatpush.msra.mxu0 0.0
    %245 = vmatpush.msra.mxu0 0.0
    %246 = vmatpush.msra.mxu0 0.0
    %247 = vmatpush.msra.mxu0 0.0
    %248 = vmatpush.msra.mxu0 0.0
    %249 = vmatpush.msra.mxu0 0.0
    %250 = vmatpush.msra.mxu0 0.0
    %251 = vmatpush.msra.mxu0 0.0
    %252 = vmatpush.msra.mxu0 %v93
    %253 = vmatpush.msra.mxu0 %v92
    %254 = vmatpush.msra.mxu0 %v91
    %255 = vmatpush.msra.mxu0 %v90
    %256 = vmatmul.f32.gmra.mxu0 %v238
    %v257 = vpop.f32.mrf.mxu0
    %v258 = vadd.f32 0.0, %v257
    %259 = vdwg.mxu0
    %v260 = vadd.f32 %v234, %v258
    %v261 = vxor.u32 %v260, 2147483648
    %v262 = vmul.f32 %v261, 1.442695
    %v263 = vpow.pop %v262
    %v264 = vadd.f32 %v263, 1.0
    %v265 = vrcp.pop %v264
    %v266 = vmul.f32 %v264, %v265
    %v267 = vsub.f32 1.0, %v266
    %v268 = vmul.f32 %v265, %v267
    %v269 = vadd.f32 %v265, %v268
    %vm270 = vweird.f32 %v264
    %vm271 = vweird.f32 %v265
    %vm272 = vmor %vm270, %vm271
    %v273 = vsel %vm272, %v265, %v269
    %v274 = vand.u32 2147483647, %v264
    %vm275 = vcmp.eq.f32.partialorder %v274, 8.507059e+37
    %v276 = vand.u32 %v264, 2147483648
    %v277 = vor.u32 1.1754944e-38, %v276
    %v278 = vsel %vm275, %v277, %v273
    %v279 = vmul.f32 1.0, %v278
    %v280 = vtanh.pop %v260
    %v281 = vmul.f32 %v279, %v226
    %283 = vrot.lane.b32.xlu0 %v280, 64
    %v284 = vpop.permute.xlu0 %283
    %v286 = vmul.f32 %v279, %v284
    %288 = vrot.lane.b32.xlu0 %v286, 32
    %v289 = vpop.permute.xlu0 %288
    %v291 = vadd.f32 %v281, %v289
    %v292 = vtanh.pop %v291
    %294 = vrot.lane.b32.xlu0 %v292, 64
    %v295 = vpop.permute.xlu0 %294
    %v297 = vmul.f32 %v279, %v295
    %s298 = scalar_lea.vmem [#allocation6], 6
    %v299 = vld [vmem:[%s298] sm:$0x3]
    %301 = vrot.lane.b32.xlu0 %v297, 32
    %v302 = vpop.permute.xlu0 %301
    %v303 = vsel %vm106, %v302, 0
    %305 = vmatpush.msra.mxu0 0.0
    %306 = vmatpush.msra.mxu0 0.0
    %307 = vmatpush.msra.mxu0 0.0
    %308 = vmatpush.msra.mxu0 0.0
    %309 = vmatpush.msra.mxu0 0.0
    %310 = vmatpush.msra.mxu0 0.0
    %311 = vmatpush.msra.mxu0 0.0
    %312 = vmatpush.msra.mxu0 0.0
    %313 = vmatpush.msra.mxu0 0.0
    %314 = vmatpush.msra.mxu0 0.0
    %315 = vmatpush.msra.mxu0 0.0
    %316 = vmatpush.msra.mxu0 0.0
    %317 = vmatpush.msra.mxu0 %v93
    %318 = vmatpush.msra.mxu0 %v92
    %319 = vmatpush.msra.mxu0 %v91
    %320 = vmatpush.msra.mxu0 %v90
    %321 = vmatmul.f32.gmra.mxu0 %v303
    %v322 = vpop.f32.mrf.mxu0
    %v323 = vadd.f32 0.0, %v322
    %324 = vdwg.mxu0
    %v325 = vadd.f32 %v299, %v323
    %v326 = vxor.u32 %v325, 2147483648
    %v327 = vmul.f32 %v326, 1.442695
    %v328 = vpow.pop %v327
    %v329 = vadd.f32 %v328, 1.0
    %v330 = vrcp.pop %v329
    %v331 = vmul.f32 %v329, %v330
    %v332 = vsub.f32 1.0, %v331
    %v333 = vmul.f32 %v330, %v332
    %v334 = vadd.f32 %v330, %v333
    %vm335 = vweird.f32 %v329
    %vm336 = vweird.f32 %v330
    %vm337 = vmor %vm335, %vm336
    %v338 = vsel %vm337, %v330, %v334
    %v339 = vand.u32 2147483647, %v329
    %vm340 = vcmp.eq.f32.partialorder %v339, 8.507059e+37
    %v341 = vand.u32 %v329, 2147483648
    %v342 = vor.u32 1.1754944e-38, %v341
    %v343 = vsel %vm340, %v342, %v338
    %v344 = vmul.f32 1.0, %v343
    %v345 = vtanh.pop %v325
    %v346 = vmul.f32 %v344, %v291
    %348 = vrot.lane.b32.xlu0 %v345, 64
    %v349 = vpop.permute.xlu0 %348
    %v351 = vmul.f32 %v344, %v349
    %353 = vrot.lane.b32.xlu0 %v351, 32
    %v354 = vpop.permute.xlu0 %353
    %v356 = vadd.f32 %v346, %v354
    %v357 = vtanh.pop %v356
    %359 = vrot.lane.b32.xlu0 %v357, 64
    %v360 = vpop.permute.xlu0 %359
    %v362 = vmul.f32 %v344, %v360
    %s363 = scalar_lea.vmem [#allocation6], 8
    %v364 = vld [vmem:[%s363] sm:$0x3]
    %366 = vrot.lane.b32.xlu0 %v362, 32
    %v367 = vpop.permute.xlu0 %366
    %v368 = vsel %vm106, %v367, 0
    %370 = vmatpush.msra.mxu0 0.0
    %371 = vmatpush.msra.mxu0 0.0
    %372 = vmatpush.msra.mxu0 0.0
    %373 = vmatpush.msra.mxu0 0.0
    %374 = vmatpush.msra.mxu0 0.0
    %375 = vmatpush.msra.mxu0 0.0
    %376 = vmatpush.msra.mxu0 0.0
    %377 = vmatpush.msra.mxu0 0.0
    %378 = vmatpush.msra.mxu0 0.0
    %379 = vmatpush.msra.mxu0 0.0
    %380 = vmatpush.msra.mxu0 0.0
    %381 = vmatpush.msra.mxu0 0.0
    %382 = vmatpush.msra.mxu0 %v93
    %383 = vmatpush.msra.mxu0 %v92
    %384 = vmatpush.msra.mxu0 %v91
    %385 = vmatpush.msra.mxu0 %v90
    %386 = vmatmul.f32.gmra.mxu0 %v368
    %v387 = vpop.f32.mrf.mxu0
    %v388 = vadd.f32 0.0, %v387
    %389 = vdwg.mxu0
    %v390 = vadd.f32 %v364, %v388
    %v391 = vxor.u32 %v390, 2147483648
    %v392 = vmul.f32 %v391, 1.442695
    %v393 = vpow.pop %v392
    %v394 = vadd.f32 %v393, 1.0
    %v395 = vrcp.pop %v394
    %v396 = vmul.f32 %v394, %v395
    %v397 = vsub.f32 1.0, %v396
    %v398 = vmul.f32 %v395, %v397
    %v399 = vadd.f32 %v395, %v398
    %vm400 = vweird.f32 %v394
    %vm401 = vweird.f32 %v395
    %vm402 = vmor %vm400, %vm401
    %v403 = vsel %vm402, %v395, %v399
    %v404 = vand.u32 2147483647, %v394
    %vm405 = vcmp.eq.f32.partialorder %v404, 8.507059e+37
    %v406 = vand.u32 %v394, 2147483648
    %v407 = vor.u32 1.1754944e-38, %v406
    %v408 = vsel %vm405, %v407, %v403
    %v409 = vmul.f32 1.0, %v408
    %v410 = vtanh.pop %v390
    %v411 = vmul.f32 %v409, %v356
    %413 = vrot.lane.b32.xlu0 %v410, 64
    %v414 = vpop.permute.xlu0 %413
    %v416 = vmul.f32 %v409, %v414
    %418 = vrot.lane.b32.xlu0 %v416, 32
    %v419 = vpop.permute.xlu0 %418
    %v421 = vadd.f32 %v411, %v419
    %v422 = vtanh.pop %v421
    %424 = vrot.lane.b32.xlu0 %v422, 64
    %v425 = vpop.permute.xlu0 %424
    %v427 = vmul.f32 %v409, %v425
    %s428 = scalar_lea.vmem [#allocation6], 10
    %v429 = vld [vmem:[%s428] sm:$0x3]
    %431 = vrot.lane.b32.xlu0 %v427, 32
    %v432 = vpop.permute.xlu0 %431
    %v433 = vsel %vm106, %v432, 0
    %435 = vmatpush.msra.mxu0 0.0
    %436 = vmatpush.msra.mxu0 0.0
    %437 = vmatpush.msra.mxu0 0.0
    %438 = vmatpush.msra.mxu0 0.0
    %439 = vmatpush.msra.mxu0 0.0
    %440 = vmatpush.msra.mxu0 0.0
    %441 = vmatpush.msra.mxu0 0.0
    %442 = vmatpush.msra.mxu0 0.0
    %443 = vmatpush.msra.mxu0 0.0
    %444 = vmatpush.msra.mxu0 0.0
    %445 = vmatpush.msra.mxu0 0.0
    %446 = vmatpush.msra.mxu0 0.0
    %447 = vmatpush.msra.mxu0 %v93
    %448 = vmatpush.msra.mxu0 %v92
    %449 = vmatpush.msra.mxu0 %v91
    %450 = vmatpush.msra.mxu0 %v90
    %451 = vmatmul.f32.gmra.mxu0 %v433
    %v452 = vpop.f32.mrf.mxu0
    %v453 = vadd.f32 0.0, %v452
    %454 = vdwg.mxu0
    %v455 = vadd.f32 %v429, %v453
    %v456 = vxor.u32 %v455, 2147483648
    %v457 = vmul.f32 %v456, 1.442695
    %v458 = vpow.pop %v457
    %v459 = vadd.f32 %v458, 1.0
    %v460 = vrcp.pop %v459
    %v461 = vmul.f32 %v459, %v460
    %v462 = vsub.f32 1.0, %v461
    %v463 = vmul.f32 %v460, %v462
    %v464 = vadd.f32 %v460, %v463
    %vm465 = vweird.f32 %v459
    %vm466 = vweird.f32 %v460
    %vm467 = vmor %vm465, %vm466
    %v468 = vsel %vm467, %v460, %v464
    %v469 = vand.u32 2147483647, %v459
    %vm470 = vcmp.eq.f32.partialorder %v469, 8.507059e+37
    %v471 = vand.u32 %v459, 2147483648
    %v472 = vor.u32 1.1754944e-38, %v471
    %v473 = vsel %vm470, %v472, %v468
    %v474 = vmul.f32 1.0, %v473
    %v475 = vtanh.pop %v455
    %v476 = vmul.f32 %v474, %v421
    %478 = vrot.lane.b32.xlu0 %v475, 64
    %v479 = vpop.permute.xlu0 %478
    %v481 = vmul.f32 %v474, %v479
    %483 = vrot.lane.b32.xlu0 %v481, 32
    %v484 = vpop.permute.xlu0 %483
    %v486 = vadd.f32 %v476, %v484
    %v487 = vtanh.pop %v486
    %489 = vrot.lane.b32.xlu0 %v487, 64
    %v490 = vpop.permute.xlu0 %489
    %v492 = vmul.f32 %v474, %v490
    %s493 = scalar_lea.vmem [#allocation6], 12
    %v494 = vld [vmem:[%s493] sm:$0x3]
    %496 = vrot.lane.b32.xlu0 %v492, 32
    %v497 = vpop.permute.xlu0 %496
    %v498 = vsel %vm106, %v497, 0
    %500 = vmatpush.msra.mxu0 0.0
    %501 = vmatpush.msra.mxu0 0.0
    %502 = vmatpush.msra.mxu0 0.0
    %503 = vmatpush.msra.mxu0 0.0
    %504 = vmatpush.msra.mxu0 0.0
    %505 = vmatpush.msra.mxu0 0.0
    %506 = vmatpush.msra.mxu0 0.0
    %507 = vmatpush.msra.mxu0 0.0
    %508 = vmatpush.msra.mxu0 0.0
    %509 = vmatpush.msra.mxu0 0.0
    %510 = vmatpush.msra.mxu0 0.0
    %511 = vmatpush.msra.mxu0 0.0
    %512 = vmatpush.msra.mxu0 %v93
    %513 = vmatpush.msra.mxu0 %v92
    %514 = vmatpush.msra.mxu0 %v91
    %515 = vmatpush.msra.mxu0 %v90
    %516 = vmatmul.f32.gmra.mxu0 %v498
    %v517 = vpop.f32.mrf.mxu0
    %v518 = vadd.f32 0.0, %v517
    %519 = vdwg.mxu0
    %v520 = vadd.f32 %v494, %v518
    %v521 = vxor.u32 %v520, 2147483648
    %v522 = vmul.f32 %v521, 1.442695
    %v523 = vpow.pop %v522
    %v524 = vadd.f32 %v523, 1.0
    %v525 = vrcp.pop %v524
    %v526 = vmul.f32 %v524, %v525
    %v527 = vsub.f32 1.0, %v526
    %v528 = vmul.f32 %v525, %v527
    %v529 = vadd.f32 %v525, %v528
    %vm530 = vweird.f32 %v524
    %vm531 = vweird.f32 %v525
    %vm532 = vmor %vm530, %vm531
    %v533 = vsel %vm532, %v525, %v529
    %v534 = vand.u32 2147483647, %v524
    %vm535 = vcmp.eq.f32.partialorder %v534, 8.507059e+37
    %v536 = vand.u32 %v524, 2147483648
    %v537 = vor.u32 1.1754944e-38, %v536
    %v538 = vsel %vm535, %v537, %v533
    %v539 = vmul.f32 1.0, %v538
    %v540 = vtanh.pop %v520
    %v541 = vmul.f32 %v539, %v486
    %543 = vrot.lane.b32.xlu0 %v540, 64
    %v544 = vpop.permute.xlu0 %543
    %v546 = vmul.f32 %v539, %v544
    %548 = vrot.lane.b32.xlu0 %v546, 32
    %v549 = vpop.permute.xlu0 %548
    %v551 = vadd.f32 %v541, %v549
    %v552 = vtanh.pop %v551
    %554 = vrot.lane.b32.xlu0 %v552, 64
    %v555 = vpop.permute.xlu0 %554
    %v557 = vmul.f32 %v539, %v555
    %vm558 = vcmask 123904
    %559 = vst.msk [vmem:[#allocation10] sm:$0x3] %vm558, 0.0
    %v560 = vlaneseq
    %v561 = vand.u32 %v560, 127
    %v562 = vcvt.s32.f32 %v561
    %v563 = vld [vmem:[#allocation7] sm:$0x3]
    %v564 = vadd.f32 %v563, 0.0
    %566 = vrot.lane.b32.xlu0 %v557, 32
    %v567 = vpop.permute.xlu0 %566
    %v568 = vsel %vm106, %v567, 0
    %570 = vmatpush.msra.mxu0 0.0
    %571 = vmatpush.msra.mxu0 0.0
    %572 = vmatpush.msra.mxu0 0.0
    %573 = vmatpush.msra.mxu0 0.0
    %574 = vmatpush.msra.mxu0 0.0
    %575 = vmatpush.msra.mxu0 0.0
    %576 = vmatpush.msra.mxu0 0.0
    %577 = vmatpush.msra.mxu0 0.0
    %578 = vmatpush.msra.mxu0 0.0
    %579 = vmatpush.msra.mxu0 0.0
    %580 = vmatpush.msra.mxu0 0.0
    %581 = vmatpush.msra.mxu0 0.0
    %582 = vmatpush.msra.mxu0 %v97
    %583 = vmatpush.msra.mxu0 %v96
    %584 = vmatpush.msra.mxu0 %v95
    %585 = vmatpush.msra.mxu0 %v94
    %586 = vmatmul.f32.gmra.mxu0 %v568
    %v587 = vpop.f32.mrf.mxu0
    %v588 = vadd.f32 0.0, %v587
    %589 = vdwg.mxu0
    %v590 = vadd.f32 %v564, %v588
    %v591 = vxor.u32 %v590, 2147483648
    %v592 = vmul.f32 %v591, 1.442695
    %v593 = vpow.pop %v592
    %v594 = vadd.f32 %v593, 1.0
    %v595 = vrcp.pop %v594
    %v596 = vmul.f32 %v594, %v595
    %v597 = vsub.f32 1.0, %v596
    %v598 = vmul.f32 %v595, %v597
    %v599 = vadd.f32 %v595, %v598
    %vm600 = vweird.f32 %v594
    %vm601 = vweird.f32 %v595
    %vm602 = vmor %vm600, %vm601
    %v603 = vsel %vm602, %v595, %v599
    %v604 = vand.u32 2147483647, %v594
    %vm605 = vcmp.eq.f32.partialorder %v604, 8.507059e+37
    %v606 = vand.u32 %v594, 2147483648
    %v607 = vor.u32 1.1754944e-38, %v606
    %v608 = vsel %vm605, %v607, %v603
    %v609 = vmul.f32 1.0, %v608
    %v610 = vtanh.pop %v590
    %v611 = vmul.f32 %v609, %v551
    %613 = vrot.lane.b32.xlu0 %v610, 64
    %v614 = vpop.permute.xlu0 %613
    %v616 = vmul.f32 %v609, %v614
    %618 = vrot.lane.b32.xlu0 %v616, 32
    %v619 = vpop.permute.xlu0 %618
    %v621 = vadd.f32 %v611, %v619
    %v622 = vtanh.pop %v621
    %624 = vrot.lane.b32.xlu0 %v622, 64
    %v625 = vpop.permute.xlu0 %624
    %v627 = vmul.f32 %v609, %v625
    %v629 = vperm.slane %v104, 0
    %632 = vrot.lane.b32.xlu0 %v627, 32
    %v633 = vpop.permute.xlu0 %632
    %v634 = vsel %vm106, %v633, 0
    %636 = vmatpush.msra.mxu0 0.0
    %637 = vmatpush.msra.mxu0 0.0
    %638 = vmatpush.msra.mxu0 0.0
    %639 = vmatpush.msra.mxu0 0.0
    %640 = vmatpush.msra.mxu0 0.0
    %641 = vmatpush.msra.mxu0 0.0
    %642 = vmatpush.msra.mxu0 0.0
    %643 = vmatpush.msra.mxu0 0.0
    %644 = vmatpush.msra.mxu0 0.0
    %645 = vmatpush.msra.mxu0 0.0
    %646 = vmatpush.msra.mxu0 0.0
    %647 = vmatpush.msra.mxu0 0.0
    %648 = vmatpush.msra.mxu0 %v103
    %649 = vmatpush.msra.mxu0 %v102
    %650 = vmatpush.msra.mxu0 %v101
    %651 = vmatpush.msra.mxu0 %v100
    %652 = vmatmul.f32.gmra.mxu0 %v634
    %v653 = vpop.f32.mrf.mxu0
    %v654 = vadd.f32 %v629, %v653
    %655 = vdwg.mxu0
    %s656 = scalar_lea.vmem [#allocation10], 2
    %657 = vst.msk [vmem:[%s656] sm:$0x3] %vm558, %v654
    %v658 = vsel %vm558, %v654, -inf
    %659 = vmax.xlane.f32.xlu0 %v658
    %v660 = vpop.xlane.xlu0 %659
    %vm661 = vcmp.eq.f32.partialorder %v654, %v660
    %v662 = vsel %vm661, %v562, 16.0
    %v663 = vsel %vm558, %v662, inf
    %664 = vmin.xlane.f32.xlu0 %v663
    %v665 = vpop.xlane.xlu0 %664
    %vm666 = vcmp.eq.f32.partialorder %v562, %v665
    %v667 = vsel %vm666, 1, 0
    %v668 = vcvt.s32.f32 %v667
    %vm669 = vcmask 130048
    %v671 = vsel %vm669, %v668, 0
    %673 = vmatpush.msra.mxu0 0.0
    %674 = vmatpush.msra.mxu0 0.0
    %675 = vmatpush.msra.mxu0 0.0
    %676 = vmatpush.msra.mxu0 0.0
    %677 = vmatpush.msra.mxu0 0.0
    %678 = vmatpush.msra.mxu0 0.0
    %679 = vmatpush.msra.mxu0 0.0
    %680 = vmatpush.msra.mxu0 0.0
    %681 = vmatpush.msra.mxu0 0.0
    %682 = vmatpush.msra.mxu0 0.0
    %683 = vmatpush.msra.mxu0 0.0
    %684 = vmatpush.msra.mxu0 0.0
    %685 = vmatpush.msra.mxu0 0.0
    %686 = vmatpush.msra.mxu0 0.0
    %687 = vmatpush.msra.mxu0 %v99
    %688 = vmatpush.msra.mxu0 %v98
    %689 = vmatmul.f32.gmra.mxu0 %v671
    %v690 = vpop.f32.mrf.mxu0
    %v691 = vadd.f32 0.0, %v690
    %692 = vdwg.mxu0
    %s693 = sld [smem:[#allocation2 + $0x1]]
    %p694 = scmp.ne.s32.totalorder %s693, 0
    %s695 = scalar_select %p694, 1, 0
    %s696 = scvt.s32.f32 %s695
    %s697 = scalar_lea.vmem [#allocation7], 2
    %v698 = vld [vmem:[%s697] sm:$0x3]
    %v699 = vstv %s696
    %v700 = vmul.f32 %v699, %v698
    %s701 = ssub.f32 1.0, %s696
    %v702 = vstv %s701
    %v703 = vmul.f32 %v702, %v691
    %v704 = vadd.f32 %v700, %v703
    %705 = vmatpush.msra.mxu0 0.0
    %706 = vmatpush.msra.mxu0 0.0
    %707 = vmatpush.msra.mxu0 0.0
    %708 = vmatpush.msra.mxu0 0.0
    %709 = vmatpush.msra.mxu0 0.0
    %710 = vmatpush.msra.mxu0 0.0
    %711 = vmatpush.msra.mxu0 0.0
    %712 = vmatpush.msra.mxu0 0.0
    %713 = vmatpush.msra.mxu0 0.0
    %714 = vmatpush.msra.mxu0 0.0
    %715 = vmatpush.msra.mxu0 0.0
    %716 = vmatpush.msra.mxu0 0.0
    %717 = vmatpush.msra.mxu0 %v97
    %718 = vmatpush.msra.mxu0 %v96
    %719 = vmatpush.msra.mxu0 %v95
    %720 = vmatpush.msra.mxu0 %v94
    %721 = vmatmul.f32.gmra.mxu0 %v634
    %v722 = vpop.f32.mrf.mxu0
    %v723 = vadd.f32 0.0, %v722
    %724 = vdwg.mxu0
    %v725 = vadd.f32 %v704, %v723
    %v726 = vxor.u32 %v725, 2147483648
    %v727 = vmul.f32 %v726, 1.442695
    %v728 = vpow.pop %v727
    %v729 = vadd.f32 %v728, 1.0
    %v730 = vrcp.pop %v729
    %v731 = vmul.f32 %v729, %v730
    %v732 = vsub.f32 1.0, %v731
    %v733 = vmul.f32 %v730, %v732
    %v734 = vadd.f32 %v730, %v733
    %vm735 = vweird.f32 %v729
    %vm736 = vweird.f32 %v730
    %vm737 = vmor %vm735, %vm736
    %v738 = vsel %vm737, %v730, %v734
    %v739 = vand.u32 2147483647, %v729
    %vm740 = vcmp.eq.f32.partialorder %v739, 8.507059e+37
    %v741 = vand.u32 %v729, 2147483648
    %v742 = vor.u32 1.1754944e-38, %v741
    %v743 = vsel %vm740, %v742, %v738
    %v744 = vmul.f32 1.0, %v743
    %v745 = vtanh.pop %v725
    %v746 = vmul.f32 %v744, %v621
    %748 = vrot.lane.b32.xlu0 %v745, 64
    %v749 = vpop.permute.xlu0 %748
    %v751 = vmul.f32 %v744, %v749
    %753 = vrot.lane.b32.xlu0 %v751, 32
    %v754 = vpop.permute.xlu0 %753
    %v756 = vadd.f32 %v746, %v754
    %v757 = vtanh.pop %v756
    %759 = vrot.lane.b32.xlu0 %v757, 64
    %v760 = vpop.permute.xlu0 %759
    %v762 = vmul.f32 %v744, %v760
    %764 = vrot.lane.b32.xlu0 %v762, 32
    %v765 = vpop.permute.xlu0 %764
    %v766 = vsel %vm106, %v765, 0
    %768 = vmatpush.msra.mxu0 0.0
    %769 = vmatpush.msra.mxu0 0.0
    %770 = vmatpush.msra.mxu0 0.0
    %771 = vmatpush.msra.mxu0 0.0
    %772 = vmatpush.msra.mxu0 0.0
    %773 = vmatpush.msra.mxu0 0.0
    %774 = vmatpush.msra.mxu0 0.0
    %775 = vmatpush.msra.mxu0 0.0
    %776 = vmatpush.msra.mxu0 0.0
    %777 = vmatpush.msra.mxu0 0.0
    %778 = vmatpush.msra.mxu0 0.0
    %779 = vmatpush.msra.mxu0 0.0
    %780 = vmatpush.msra.mxu0 %v103
    %781 = vmatpush.msra.mxu0 %v102
    %782 = vmatpush.msra.mxu0 %v101
    %783 = vmatpush.msra.mxu0 %v100
    %784 = vmatmul.f32.gmra.mxu0 %v766
    %v785 = vpop.f32.mrf.mxu0
    %v786 = vadd.f32 %v629, %v785
    %787 = vdwg.mxu0
    %s788 = scalar_lea.vmem [#allocation10], 4
    %789 = vst.msk [vmem:[%s788] sm:$0x3] %vm558, %v786
    %v790 = vsel %vm558, %v786, -inf
    %791 = vmax.xlane.f32.xlu0 %v790
    %v792 = vpop.xlane.xlu0 %791
    %vm793 = vcmp.eq.f32.partialorder %v786, %v792
    %v794 = vsel %vm793, %v562, 16.0
    %v795 = vsel %vm558, %v794, inf
    %796 = vmin.xlane.f32.xlu0 %v795
    %v797 = vpop.xlane.xlu0 %796
    %vm798 = vcmp.eq.f32.partialorder %v562, %v797
    %v799 = vsel %vm798, 1, 0
    %v800 = vcvt.s32.f32 %v799
    %v802 = vsel %vm669, %v800, 0
    %804 = vmatpush.msra.mxu0 0.0
    %805 = vmatpush.msra.mxu0 0.0
    %806 = vmatpush.msra.mxu0 0.0
    %807 = vmatpush.msra.mxu0 0.0
    %808 = vmatpush.msra.mxu0 0.0
    %809 = vmatpush.msra.mxu0 0.0
    %810 = vmatpush.msra.mxu0 0.0
    %811 = vmatpush.msra.mxu0 0.0
    %812 = vmatpush.msra.mxu0 0.0
    %813 = vmatpush.msra.mxu0 0.0
    %814 = vmatpush.msra.mxu0 0.0
    %815 = vmatpush.msra.mxu0 0.0
    %816 = vmatpush.msra.mxu0 0.0
    %817 = vmatpush.msra.mxu0 0.0
    %818 = vmatpush.msra.mxu0 %v99
    %819 = vmatpush.msra.mxu0 %v98
    %820 = vmatmul.f32.gmra.mxu0 %v802
    %v821 = vpop.f32.mrf.mxu0
    %v822 = vadd.f32 0.0, %v821
    %823 = vdwg.mxu0
    %s824 = sld [smem:[#allocation2 + $0x2]]
    %p825 = scmp.ne.s32.totalorder %s824, 0
    %s826 = scalar_select %p825, 1, 0
    %s827 = scvt.s32.f32 %s826
    %s828 = scalar_lea.vmem [#allocation7], 4
    %v829 = vld [vmem:[%s828] sm:$0x3]
    %v830 = vstv %s827
    %v831 = vmul.f32 %v830, %v829
    %s832 = ssub.f32 1.0, %s827
    %v833 = vstv %s832
    %v834 = vmul.f32 %v833, %v822
    %v835 = vadd.f32 %v831, %v834
    %836 = vmatpush.msra.mxu0 0.0
    %837 = vmatpush.msra.mxu0 0.0
    %838 = vmatpush.msra.mxu0 0.0
    %839 = vmatpush.msra.mxu0 0.0
    %840 = vmatpush.msra.mxu0 0.0
    %841 = vmatpush.msra.mxu0 0.0
    %842 = vmatpush.msra.mxu0 0.0
    %843 = vmatpush.msra.mxu0 0.0
    %844 = vmatpush.msra.mxu0 0.0
    %845 = vmatpush.msra.mxu0 0.0
    %846 = vmatpush.msra.mxu0 0.0
    %847 = vmatpush.msra.mxu0 0.0
    %848 = vmatpush.msra.mxu0 %v97
    %849 = vmatpush.msra.mxu0 %v96
    %850 = vmatpush.msra.mxu0 %v95
    %851 = vmatpush.msra.mxu0 %v94
    %852 = vmatmul.f32.gmra.mxu0 %v766
    %v853 = vpop.f32.mrf.mxu0
    %v854 = vadd.f32 0.0, %v853
    %855 = vdwg.mxu0
    %v856 = vadd.f32 %v835, %v854
    %v857 = vxor.u32 %v856, 2147483648
    %v858 = vmul.f32 %v857, 1.442695
    %v859 = vpow.pop %v858
    %v860 = vadd.f32 %v859, 1.0
    %v861 = vrcp.pop %v860
    %v862 = vmul.f32 %v860, %v861
    %v863 = vsub.f32 1.0, %v862
    %v864 = vmul.f32 %v861, %v863
    %v865 = vadd.f32 %v861, %v864
    %vm866 = vweird.f32 %v860
    %vm867 = vweird.f32 %v861
    %vm868 = vmor %vm866, %vm867
    %v869 = vsel %vm868, %v861, %v865
    %v870 = vand.u32 2147483647, %v860
    %vm871 = vcmp.eq.f32.partialorder %v870, 8.507059e+37
    %v872 = vand.u32 %v860, 2147483648
    %v873 = vor.u32 1.1754944e-38, %v872
    %v874 = vsel %vm871, %v873, %v869
    %v875 = vmul.f32 1.0, %v874
    %v876 = vtanh.pop %v856
    %v877 = vmul.f32 %v875, %v756
    %879 = vrot.lane.b32.xlu0 %v876, 64
    %v880 = vpop.permute.xlu0 %879
    %v882 = vmul.f32 %v875, %v880
    %884 = vrot.lane.b32.xlu0 %v882, 32
    %v885 = vpop.permute.xlu0 %884
    %v887 = vadd.f32 %v877, %v885
    %v888 = vtanh.pop %v887
    %890 = vrot.lane.b32.xlu0 %v888, 64
    %v891 = vpop.permute.xlu0 %890
    %v893 = vmul.f32 %v875, %v891
    %895 = vrot.lane.b32.xlu0 %v893, 32
    %v896 = vpop.permute.xlu0 %895
    %v897 = vsel %vm106, %v896, 0
    %899 = vmatpush.msra.mxu0 0.0
    %900 = vmatpush.msra.mxu0 0.0
    %901 = vmatpush.msra.mxu0 0.0
    %902 = vmatpush.msra.mxu0 0.0
    %903 = vmatpush.msra.mxu0 0.0
    %904 = vmatpush.msra.mxu0 0.0
    %905 = vmatpush.msra.mxu0 0.0
    %906 = vmatpush.msra.mxu0 0.0
    %907 = vmatpush.msra.mxu0 0.0
    %908 = vmatpush.msra.mxu0 0.0
    %909 = vmatpush.msra.mxu0 0.0
    %910 = vmatpush.msra.mxu0 0.0
    %911 = vmatpush.msra.mxu0 %v103
    %912 = vmatpush.msra.mxu0 %v102
    %913 = vmatpush.msra.mxu0 %v101
    %914 = vmatpush.msra.mxu0 %v100
    %915 = vmatmul.f32.gmra.mxu0 %v897
    %v916 = vpop.f32.mrf.mxu0
    %v917 = vadd.f32 %v629, %v916
    %918 = vdwg.mxu0
    %s919 = scalar_lea.vmem [#allocation10], 6
    %920 = vst.msk [vmem:[%s919] sm:$0x3] %vm558, %v917
    %v921 = vsel %vm558, %v917, -inf
    %922 = vmax.xlane.f32.xlu0 %v921
    %v923 = vpop.xlane.xlu0 %922
    %vm924 = vcmp.eq.f32.partialorder %v917, %v923
    %v925 = vsel %vm924, %v562, 16.0
    %v926 = vsel %vm558, %v925, inf
    %927 = vmin.xlane.f32.xlu0 %v926
    %v928 = vpop.xlane.xlu0 %927
    %vm929 = vcmp.eq.f32.partialorder %v562, %v928
    %v930 = vsel %vm929, 1, 0
    %v931 = vcvt.s32.f32 %v930
    %v933 = vsel %vm669, %v931, 0
    %935 = vmatpush.msra.mxu0 0.0
    %936 = vmatpush.msra.mxu0 0.0
    %937 = vmatpush.msra.mxu0 0.0
    %938 = vmatpush.msra.mxu0 0.0
    %939 = vmatpush.msra.mxu0 0.0
    %940 = vmatpush.msra.mxu0 0.0
    %941 = vmatpush.msra.mxu0 0.0
    %942 = vmatpush.msra.mxu0 0.0
    %943 = vmatpush.msra.mxu0 0.0
    %944 = vmatpush.msra.mxu0 0.0
    %945 = vmatpush.msra.mxu0 0.0
    %946 = vmatpush.msra.mxu0 0.0
    %947 = vmatpush.msra.mxu0 0.0
    %948 = vmatpush.msra.mxu0 0.0
    %949 = vmatpush.msra.mxu0 %v99
    %950 = vmatpush.msra.mxu0 %v98
    %951 = vmatmul.f32.gmra.mxu0 %v933
    %v952 = vpop.f32.mrf.mxu0
    %v953 = vadd.f32 0.0, %v952
    %954 = vdwg.mxu0
    %s955 = sld [smem:[#allocation2 + $0x3]]
    %p956 = scmp.ne.s32.totalorder %s955, 0
    %s957 = scalar_select %p956, 1, 0
    %s958 = scvt.s32.f32 %s957
    %s959 = scalar_lea.vmem [#allocation7], 6
    %v960 = vld [vmem:[%s959] sm:$0x3]
    %v961 = vstv %s958
    %v962 = vmul.f32 %v961, %v960
    %s963 = ssub.f32 1.0, %s958
    %v964 = vstv %s963
    %v965 = vmul.f32 %v964, %v953
    %v966 = vadd.f32 %v962, %v965
    %967 = vmatpush.msra.mxu0 0.0
    %968 = vmatpush.msra.mxu0 0.0
    %969 = vmatpush.msra.mxu0 0.0
    %970 = vmatpush.msra.mxu0 0.0
    %971 = vmatpush.msra.mxu0 0.0
    %972 = vmatpush.msra.mxu0 0.0
    %973 = vmatpush.msra.mxu0 0.0
    %974 = vmatpush.msra.mxu0 0.0
    %975 = vmatpush.msra.mxu0 0.0
    %976 = vmatpush.msra.mxu0 0.0
    %977 = vmatpush.msra.mxu0 0.0
    %978 = vmatpush.msra.mxu0 0.0
    %979 = vmatpush.msra.mxu0 %v97
    %980 = vmatpush.msra.mxu0 %v96
    %981 = vmatpush.msra.mxu0 %v95
    %982 = vmatpush.msra.mxu0 %v94
    %983 = vmatmul.f32.gmra.mxu0 %v897
    %v984 = vpop.f32.mrf.mxu0
    %v985 = vadd.f32 0.0, %v984
    %986 = vdwg.mxu0
    %v987 = vadd.f32 %v966, %v985
    %v988 = vxor.u32 %v987, 2147483648
    %v989 = vmul.f32 %v988, 1.442695
    %v990 = vpow.pop %v989
    %v991 = vadd.f32 %v990, 1.0
    %v992 = vrcp.pop %v991
    %v993 = vmul.f32 %v991, %v992
    %v994 = vsub.f32 1.0, %v993
    %v995 = vmul.f32 %v992, %v994
    %v996 = vadd.f32 %v992, %v995
    %vm997 = vweird.f32 %v991
    %vm998 = vweird.f32 %v992
    %vm999 = vmor %vm997, %vm998
    %v1000 = vsel %vm999, %v992, %v996
    %v1001 = vand.u32 2147483647, %v991
    %vm1002 = vcmp.eq.f32.partialorder %v1001, 8.507059e+37
    %v1003 = vand.u32 %v991, 2147483648
    %v1004 = vor.u32 1.1754944e-38, %v1003
    %v1005 = vsel %vm1002, %v1004, %v1000
    %v1006 = vmul.f32 1.0, %v1005
    %v1007 = vtanh.pop %v987
    %v1008 = vmul.f32 %v1006, %v887
    %1010 = vrot.lane.b32.xlu0 %v1007, 64
    %v1011 = vpop.permute.xlu0 %1010
    %v1013 = vmul.f32 %v1006, %v1011
    %1015 = vrot.lane.b32.xlu0 %v1013, 32
    %v1016 = vpop.permute.xlu0 %1015
    %v1018 = vadd.f32 %v1008, %v1016
    %v1019 = vtanh.pop %v1018
    %1021 = vrot.lane.b32.xlu0 %v1019, 64
    %v1022 = vpop.permute.xlu0 %1021
    %v1024 = vmul.f32 %v1006, %v1022
    %1026 = vrot.lane.b32.xlu0 %v1024, 32
    %v1027 = vpop.permute.xlu0 %1026
    %v1028 = vsel %vm106, %v1027, 0
    %1030 = vmatpush.msra.mxu0 0.0
    %1031 = vmatpush.msra.mxu0 0.0
    %1032 = vmatpush.msra.mxu0 0.0
    %1033 = vmatpush.msra.mxu0 0.0
    %1034 = vmatpush.msra.mxu0 0.0
    %1035 = vmatpush.msra.mxu0 0.0
    %1036 = vmatpush.msra.mxu0 0.0
    %1037 = vmatpush.msra.mxu0 0.0
    %1038 = vmatpush.msra.mxu0 0.0
    %1039 = vmatpush.msra.mxu0 0.0
    %1040 = vmatpush.msra.mxu0 0.0
    %1041 = vmatpush.msra.mxu0 0.0
    %1042 = vmatpush.msra.mxu0 %v103
    %1043 = vmatpush.msra.mxu0 %v102
    %1044 = vmatpush.msra.mxu0 %v101
    %1045 = vmatpush.msra.mxu0 %v100
    %1046 = vmatmul.f32.gmra.mxu0 %v1028
    %v1047 = vpop.f32.mrf.mxu0
    %v1048 = vadd.f32 %v629, %v1047
    %1049 = vdwg.mxu0
    %s1050 = scalar_lea.vmem [#allocation10], 8
    %1051 = vst.msk [vmem:[%s1050] sm:$0x3] %vm558, %v1048
    %v1052 = vsel %vm558, %v1048, -inf
    %1053 = vmax.xlane.f32.xlu0 %v1052
    %v1054 = vpop.xlane.xlu0 %1053
    %vm1055 = vcmp.eq.f32.partialorder %v1048, %v1054
    %v1056 = vsel %vm1055, %v562, 16.0
    %v1057 = vsel %vm558, %v1056, inf
    %1058 = vmin.xlane.f32.xlu0 %v1057
    %v1059 = vpop.xlane.xlu0 %1058
    %vm1060 = vcmp.eq.f32.partialorder %v562, %v1059
    %v1061 = vsel %vm1060, 1, 0
    %v1062 = vcvt.s32.f32 %v1061
    %v1064 = vsel %vm669, %v1062, 0
    %1066 = vmatpush.msra.mxu0 0.0
    %1067 = vmatpush.msra.mxu0 0.0
    %1068 = vmatpush.msra.mxu0 0.0
    %1069 = vmatpush.msra.mxu0 0.0
    %1070 = vmatpush.msra.mxu0 0.0
    %1071 = vmatpush.msra.mxu0 0.0
    %1072 = vmatpush.msra.mxu0 0.0
    %1073 = vmatpush.msra.mxu0 0.0
    %1074 = vmatpush.msra.mxu0 0.0
    %1075 = vmatpush.msra.mxu0 0.0
    %1076 = vmatpush.msra.mxu0 0.0
    %1077 = vmatpush.msra.mxu0 0.0
    %1078 = vmatpush.msra.mxu0 0.0
    %1079 = vmatpush.msra.mxu0 0.0
    %1080 = vmatpush.msra.mxu0 %v99
    %1081 = vmatpush.msra.mxu0 %v98
    %1082 = vmatmul.f32.gmra.mxu0 %v1064
    %v1083 = vpop.f32.mrf.mxu0
    %v1084 = vadd.f32 0.0, %v1083
    %1085 = vdwg.mxu0
    %s1086 = sld [smem:[#allocation2 + $0x4]]
    %p1087 = scmp.ne.s32.totalorder %s1086, 0
    %s1088 = scalar_select %p1087, 1, 0
    %s1089 = scvt.s32.f32 %s1088
    %s1090 = scalar_lea.vmem [#allocation7], 8
    %v1091 = vld [vmem:[%s1090] sm:$0x3]
    %v1092 = vstv %s1089
    %v1093 = vmul.f32 %v1092, %v1091
    %s1094 = ssub.f32 1.0, %s1089
    %v1095 = vstv %s1094
    %v1096 = vmul.f32 %v1095, %v1084
    %v1097 = vadd.f32 %v1093, %v1096
    %1098 = vmatpush.msra.mxu0 0.0
    %1099 = vmatpush.msra.mxu0 0.0
    %1100 = vmatpush.msra.mxu0 0.0
    %1101 = vmatpush.msra.mxu0 0.0
    %1102 = vmatpush.msra.mxu0 0.0
    %1103 = vmatpush.msra.mxu0 0.0
    %1104 = vmatpush.msra.mxu0 0.0
    %1105 = vmatpush.msra.mxu0 0.0
    %1106 = vmatpush.msra.mxu0 0.0
    %1107 = vmatpush.msra.mxu0 0.0
    %1108 = vmatpush.msra.mxu0 0.0
    %1109 = vmatpush.msra.mxu0 0.0
    %1110 = vmatpush.msra.mxu0 %v97
    %1111 = vmatpush.msra.mxu0 %v96
    %1112 = vmatpush.msra.mxu0 %v95
    %1113 = vmatpush.msra.mxu0 %v94
    %1114 = vmatmul.f32.gmra.mxu0 %v1028
    %v1115 = vpop.f32.mrf.mxu0
    %v1116 = vadd.f32 0.0, %v1115
    %1117 = vdwg.mxu0
    %v1118 = vadd.f32 %v1097, %v1116
    %v1119 = vxor.u32 %v1118, 2147483648
    %v1120 = vmul.f32 %v1119, 1.442695
    %v1121 = vpow.pop %v1120
    %v1122 = vadd.f32 %v1121, 1.0
    %v1123 = vrcp.pop %v1122
    %v1124 = vmul.f32 %v1122, %v1123
    %v1125 = vsub.f32 1.0, %v1124
    %v1126 = vmul.f32 %v1123, %v1125
    %v1127 = vadd.f32 %v1123, %v1126
    %vm1128 = vweird.f32 %v1122
    %vm1129 = vweird.f32 %v1123
    %vm1130 = vmor %vm1128, %vm1129
    %v1131 = vsel %vm1130, %v1123, %v1127
    %v1132 = vand.u32 2147483647, %v1122
    %vm1133 = vcmp.eq.f32.partialorder %v1132, 8.507059e+37
    %v1134 = vand.u32 %v1122, 2147483648
    %v1135 = vor.u32 1.1754944e-38, %v1134
    %v1136 = vsel %vm1133, %v1135, %v1131
    %v1137 = vmul.f32 1.0, %v1136
    %v1138 = vtanh.pop %v1118
    %v1139 = vmul.f32 %v1137, %v1018
    %1141 = vrot.lane.b32.xlu0 %v1138, 64
    %v1142 = vpop.permute.xlu0 %1141
    %v1144 = vmul.f32 %v1137, %v1142
    %1146 = vrot.lane.b32.xlu0 %v1144, 32
    %v1147 = vpop.permute.xlu0 %1146
    %v1149 = vadd.f32 %v1139, %v1147
    %v1150 = vtanh.pop %v1149
    %1152 = vrot.lane.b32.xlu0 %v1150, 64
    %v1153 = vpop.permute.xlu0 %1152
    %v1155 = vmul.f32 %v1137, %v1153
    %1157 = vrot.lane.b32.xlu0 %v1155, 32
    %v1158 = vpop.permute.xlu0 %1157
    %v1159 = vsel %vm106, %v1158, 0
    %1161 = vmatpush.msra.mxu0 0.0
    %1162 = vmatpush.msra.mxu0 0.0
    %1163 = vmatpush.msra.mxu0 0.0
    %1164 = vmatpush.msra.mxu0 0.0
    %1165 = vmatpush.msra.mxu0 0.0
    %1166 = vmatpush.msra.mxu0 0.0
    %1167 = vmatpush.msra.mxu0 0.0
    %1168 = vmatpush.msra.mxu0 0.0
    %1169 = vmatpush.msra.mxu0 0.0
    %1170 = vmatpush.msra.mxu0 0.0
    %1171 = vmatpush.msra.mxu0 0.0
    %1172 = vmatpush.msra.mxu0 0.0
    %1173 = vmatpush.msra.mxu0 %v103
    %1174 = vmatpush.msra.mxu0 %v102
    %1175 = vmatpush.msra.mxu0 %v101
    %1176 = vmatpush.msra.mxu0 %v100
    %1177 = vmatmul.f32.gmra.mxu0 %v1159
    %v1178 = vpop.f32.mrf.mxu0
    %v1179 = vadd.f32 %v629, %v1178
    %1180 = vdwg.mxu0
    %s1181 = scalar_lea.vmem [#allocation10], 10
    %1182 = vst.msk [vmem:[%s1181] sm:$0x3] %vm558, %v1179
    %v1183 = vsel %vm558, %v1179, -inf
    %1184 = vmax.xlane.f32.xlu0 %v1183
    %v1185 = vpop.xlane.xlu0 %1184
    %vm1186 = vcmp.eq.f32.partialorder %v1179, %v1185
    %v1187 = vsel %vm1186, %v562, 16.0
    %v1188 = vsel %vm558, %v1187, inf
    %1189 = vmin.xlane.f32.xlu0 %v1188
    %v1190 = vpop.xlane.xlu0 %1189
    %vm1191 = vcmp.eq.f32.partialorder %v562, %v1190
    %v1192 = vsel %vm1191, 1, 0
    %v1193 = vcvt.s32.f32 %v1192
    %v1195 = vsel %vm669, %v1193, 0
    %1197 = vmatpush.msra.mxu0 0.0
    %1198 = vmatpush.msra.mxu0 0.0
    %1199 = vmatpush.msra.mxu0 0.0
    %1200 = vmatpush.msra.mxu0 0.0
    %1201 = vmatpush.msra.mxu0 0.0
    %1202 = vmatpush.msra.mxu0 0.0
    %1203 = vmatpush.msra.mxu0 0.0
    %1204 = vmatpush.msra.mxu0 0.0
    %1205 = vmatpush.msra.mxu0 0.0
    %1206 = vmatpush.msra.mxu0 0.0
    %1207 = vmatpush.msra.mxu0 0.0
    %1208 = vmatpush.msra.mxu0 0.0
    %1209 = vmatpush.msra.mxu0 0.0
    %1210 = vmatpush.msra.mxu0 0.0
    %1211 = vmatpush.msra.mxu0 %v99
    %1212 = vmatpush.msra.mxu0 %v98
    %1213 = vmatmul.f32.gmra.mxu0 %v1195
    %v1214 = vpop.f32.mrf.mxu0
    %v1215 = vadd.f32 0.0, %v1214
    %1216 = vdwg.mxu0
    %s1217 = sld [smem:[#allocation2 + $0x5]]
    %p1218 = scmp.ne.s32.totalorder %s1217, 0
    %s1219 = scalar_select %p1218, 1, 0
    %s1220 = scvt.s32.f32 %s1219
    %s1221 = scalar_lea.vmem [#allocation7], 10
    %v1222 = vld [vmem:[%s1221] sm:$0x3]
    %v1223 = vstv %s1220
    %v1224 = vmul.f32 %v1223, %v1222
    %s1225 = ssub.f32 1.0, %s1220
    %v1226 = vstv %s1225
    %v1227 = vmul.f32 %v1226, %v1215
    %v1228 = vadd.f32 %v1224, %v1227
    %1229 = vmatpush.msra.mxu0 0.0
    %1230 = vmatpush.msra.mxu0 0.0
    %1231 = vmatpush.msra.mxu0 0.0
    %1232 = vmatpush.msra.mxu0 0.0
    %1233 = vmatpush.msra.mxu0 0.0
    %1234 = vmatpush.msra.mxu0 0.0
    %1235 = vmatpush.msra.mxu0 0.0
    %1236 = vmatpush.msra.mxu0 0.0
    %1237 = vmatpush.msra.mxu0 0.0
    %1238 = vmatpush.msra.mxu0 0.0
    %1239 = vmatpush.msra.mxu0 0.0
    %1240 = vmatpush.msra.mxu0 0.0
    %1241 = vmatpush.msra.mxu0 %v97
    %1242 = vmatpush.msra.mxu0 %v96
    %1243 = vmatpush.msra.mxu0 %v95
    %1244 = vmatpush.msra.mxu0 %v94
    %1245 = vmatmul.f32.gmra.mxu0 %v1159
    %v1246 = vpop.f32.mrf.mxu0
    %v1247 = vadd.f32 0.0, %v1246
    %1248 = vdwg.mxu0
    %v1249 = vadd.f32 %v1228, %v1247
    %v1250 = vxor.u32 %v1249, 2147483648
    %v1251 = vmul.f32 %v1250, 1.442695
    %v1252 = vpow.pop %v1251
    %v1253 = vadd.f32 %v1252, 1.0
    %v1254 = vrcp.pop %v1253
    %v1255 = vmul.f32 %v1253, %v1254
    %v1256 = vsub.f32 1.0, %v1255
    %v1257 = vmul.f32 %v1254, %v1256
    %v1258 = vadd.f32 %v1254, %v1257
    %vm1259 = vweird.f32 %v1253
    %vm1260 = vweird.f32 %v1254
    %vm1261 = vmor %vm1259, %vm1260
    %v1262 = vsel %vm1261, %v1254, %v1258
    %v1263 = vand.u32 2147483647, %v1253
    %vm1264 = vcmp.eq.f32.partialorder %v1263, 8.507059e+37
    %v1265 = vand.u32 %v1253, 2147483648
    %v1266 = vor.u32 1.1754944e-38, %v1265
    %v1267 = vsel %vm1264, %v1266, %v1262
    %v1268 = vmul.f32 1.0, %v1267
    %v1269 = vtanh.pop %v1249
    %v1270 = vmul.f32 %v1268, %v1149
    %1272 = vrot.lane.b32.xlu0 %v1269, 64
    %v1273 = vpop.permute.xlu0 %1272
    %v1275 = vmul.f32 %v1268, %v1273
    %1277 = vrot.lane.b32.xlu0 %v1275, 32
    %v1278 = vpop.permute.xlu0 %1277
    %v1280 = vadd.f32 %v1270, %v1278
    %v1281 = vtanh.pop %v1280
    %1283 = vrot.lane.b32.xlu0 %v1281, 64
    %v1284 = vpop.permute.xlu0 %1283
    %v1286 = vmul.f32 %v1268, %v1284
    %1288 = vrot.lane.b32.xlu0 %v1286, 32
    %v1289 = vpop.permute.xlu0 %1288
    %v1290 = vsel %vm106, %v1289, 0
    %1292 = vmatpush.msra.mxu0 0.0
    %1293 = vmatpush.msra.mxu0 0.0
    %1294 = vmatpush.msra.mxu0 0.0
    %1295 = vmatpush.msra.mxu0 0.0
    %1296 = vmatpush.msra.mxu0 0.0
    %1297 = vmatpush.msra.mxu0 0.0
    %1298 = vmatpush.msra.mxu0 0.0
    %1299 = vmatpush.msra.mxu0 0.0
    %1300 = vmatpush.msra.mxu0 0.0
    %1301 = vmatpush.msra.mxu0 0.0
    %1302 = vmatpush.msra.mxu0 0.0
    %1303 = vmatpush.msra.mxu0 0.0
    %1304 = vmatpush.msra.mxu0 %v103
    %1305 = vmatpush.msra.mxu0 %v102
    %1306 = vmatpush.msra.mxu0 %v101
    %1307 = vmatpush.msra.mxu0 %v100
    %1308 = vmatmul.f32.gmra.mxu0 %v1290
    %v1309 = vpop.f32.mrf.mxu0
    %v1310 = vadd.f32 %v629, %v1309
    %1311 = vdwg.mxu0
    %s1312 = scalar_lea.vmem [#allocation10], 12
    %1313 = vst.msk [vmem:[%s1312] sm:$0x3] %vm558, %v1310
    %v1314 = vsel %vm558, %v1310, -inf
    %1315 = vmax.xlane.f32.xlu0 %v1314
    %v1316 = vpop.xlane.xlu0 %1315
    %vm1317 = vcmp.eq.f32.partialorder %v1310, %v1316
    %v1318 = vsel %vm1317, %v562, 16.0
    %v1319 = vsel %vm558, %v1318, inf
    %1320 = vmin.xlane.f32.xlu0 %v1319
    %v1321 = vpop.xlane.xlu0 %1320
    %vm1322 = vcmp.eq.f32.partialorder %v562, %v1321
    %v1323 = vsel %vm1322, 1, 0
    %v1324 = vcvt.s32.f32 %v1323
    %v1326 = vsel %vm669, %v1324, 0
    %1328 = vmatpush.msra.mxu0 0.0
    %1329 = vmatpush.msra.mxu0 0.0
    %1330 = vmatpush.msra.mxu0 0.0
    %1331 = vmatpush.msra.mxu0 0.0
    %1332 = vmatpush.msra.mxu0 0.0
    %1333 = vmatpush.msra.mxu0 0.0
    %1334 = vmatpush.msra.mxu0 0.0
    %1335 = vmatpush.msra.mxu0 0.0
    %1336 = vmatpush.msra.mxu0 0.0
    %1337 = vmatpush.msra.mxu0 0.0
    %1338 = vmatpush.msra.mxu0 0.0
    %1339 = vmatpush.msra.mxu0 0.0
    %1340 = vmatpush.msra.mxu0 0.0
    %1341 = vmatpush.msra.mxu0 0.0
    %1342 = vmatpush.msra.mxu0 %v99
    %1343 = vmatpush.msra.mxu0 %v98
    %1344 = vmatmul.f32.gmra.mxu0 %v1326
    %v1345 = vpop.f32.mrf.mxu0
    %v1346 = vadd.f32 0.0, %v1345
    %1347 = vdwg.mxu0
    %s1348 = sld [smem:[#allocation2 + $0x6]]
    %p1349 = scmp.ne.s32.totalorder %s1348, 0
    %s1350 = scalar_select %p1349, 1, 0
    %s1351 = scvt.s32.f32 %s1350
    %s1352 = scalar_lea.vmem [#allocation7], 12
    %v1353 = vld [vmem:[%s1352] sm:$0x3]
    %v1354 = vstv %s1351
    %v1355 = vmul.f32 %v1354, %v1353
    %s1356 = ssub.f32 1.0, %s1351
    %v1357 = vstv %s1356
    %v1358 = vmul.f32 %v1357, %v1346
    %v1359 = vadd.f32 %v1355, %v1358
    %1360 = vmatpush.msra.mxu0 0.0
    %1361 = vmatpush.msra.mxu0 0.0
    %1362 = vmatpush.msra.mxu0 0.0
    %1363 = vmatpush.msra.mxu0 0.0
    %1364 = vmatpush.msra.mxu0 0.0
    %1365 = vmatpush.msra.mxu0 0.0
    %1366 = vmatpush.msra.mxu0 0.0
    %1367 = vmatpush.msra.mxu0 0.0
    %1368 = vmatpush.msra.mxu0 0.0
    %1369 = vmatpush.msra.mxu0 0.0
    %1370 = vmatpush.msra.mxu0 0.0
    %1371 = vmatpush.msra.mxu0 0.0
    %1372 = vmatpush.msra.mxu0 %v97
    %1373 = vmatpush.msra.mxu0 %v96
    %1374 = vmatpush.msra.mxu0 %v95
    %1375 = vmatpush.msra.mxu0 %v94
    %1376 = vmatmul.f32.gmra.mxu0 %v1290
    %v1377 = vpop.f32.mrf.mxu0
    %v1378 = vadd.f32 0.0, %v1377
    %1379 = vdwg.mxu0
    %v1380 = vadd.f32 %v1359, %v1378
    %v1381 = vxor.u32 %v1380, 2147483648
    %v1382 = vmul.f32 %v1381, 1.442695
    %v1383 = vpow.pop %v1382
    %v1384 = vadd.f32 %v1383, 1.0
    %v1385 = vrcp.pop %v1384
    %v1386 = vmul.f32 %v1384, %v1385
    %v1387 = vsub.f32 1.0, %v1386
    %v1388 = vmul.f32 %v1385, %v1387
    %v1389 = vadd.f32 %v1385, %v1388
    %vm1390 = vweird.f32 %v1384
    %vm1391 = vweird.f32 %v1385
    %vm1392 = vmor %vm1390, %vm1391
    %v1393 = vsel %vm1392, %v1385, %v1389
    %v1394 = vand.u32 2147483647, %v1384
    %vm1395 = vcmp.eq.f32.partialorder %v1394, 8.507059e+37
    %v1396 = vand.u32 %v1384, 2147483648
    %v1397 = vor.u32 1.1754944e-38, %v1396
    %v1398 = vsel %vm1395, %v1397, %v1393
    %v1399 = vmul.f32 1.0, %v1398
    %v1400 = vtanh.pop %v1380
    %v1401 = vmul.f32 %v1399, %v1280
    %1403 = vrot.lane.b32.xlu0 %v1400, 64
    %v1404 = vpop.permute.xlu0 %1403
    %v1406 = vmul.f32 %v1399, %v1404
    %1408 = vrot.lane.b32.xlu0 %v1406, 32
    %v1409 = vpop.permute.xlu0 %1408
    %v1411 = vadd.f32 %v1401, %v1409
    %v1412 = vtanh.pop %v1411
    %1414 = vrot.lane.b32.xlu0 %v1412, 64
    %v1415 = vpop.permute.xlu0 %1414
    %v1417 = vmul.f32 %v1399, %v1415
    %1419 = vrot.lane.b32.xlu0 %v1417, 32
    %v1420 = vpop.permute.xlu0 %1419
    %v1421 = vsel %vm106, %v1420, 0
    %1423 = vmatpush.msra.mxu0 0.0
    %1424 = vmatpush.msra.mxu0 0.0
    %1425 = vmatpush.msra.mxu0 0.0
    %1426 = vmatpush.msra.mxu0 0.0
    %1427 = vmatpush.msra.mxu0 0.0
    %1428 = vmatpush.msra.mxu0 0.0
    %1429 = vmatpush.msra.mxu0 0.0
    %1430 = vmatpush.msra.mxu0 0.0
    %1431 = vmatpush.msra.mxu0 0.0
    %1432 = vmatpush.msra.mxu0 0.0
    %1433 = vmatpush.msra.mxu0 0.0
    %1434 = vmatpush.msra.mxu0 0.0
    %1435 = vmatpush.msra.mxu0 %v103
    %1436 = vmatpush.msra.mxu0 %v102
    %1437 = vmatpush.msra.mxu0 %v101
    %1438 = vmatpush.msra.mxu0 %v100
    %1439 = vmatmul.f32.gmra.mxu0 %v1421
    %v1440 = vpop.f32.mrf.mxu0
    %v1441 = vadd.f32 %v629, %v1440
    %1442 = vdwg.mxu0
    %s1443 = scalar_lea.vmem [#allocation10], 14
    %1444 = vst.msk [vmem:[%s1443] sm:$0x3] %vm558, %v1441
    // Predicated region
    $region50: #{tpu_custom_call.1} parent=1 // pred_check
      _
    $region51: #{tpu_custom_call.1} parent=1 // pred_check_branch
      %1446 = sbr.rel (0) target = $region53
    $region52: #{tpu_custom_call.1} parent=1 // pred_region
      %1448 = vsyncadd [#allocation4], 0
      %s1449 = sshll.u32 [#allocation10], 4
      %s1450 = int_to_ptr.vmem [resolvable:$true] %s1449
      %s1451 = sshll.u32 %s8, 4
      %s1452 = int_to_ptr.hbm [resolvable:$true] %s1451
      %1457 = dma.vmem_to_hbm [thread:$0]  %s1450, 256, %s1452, [#allocation4], 32, 32, 2
    $region53: #{tpu_custom_call.1} parent=1 // pred_fallthru
      _
    // Predicated region
    $region54: #{tpu_custom_call.1} parent=1 // pred_check
      _
    $region55: #{tpu_custom_call.1} parent=1 // pred_check_branch
      %1459 = sbr.rel (0) target = $region57
    $region56: #{tpu_custom_call.1} parent=1 // pred_region
      %1461 = dma.done [#allocation4], 256
    $region57: #{tpu_custom_call.1} parent=1 // pred_fallthru
      _
    %1462 = vsyncpa [#allocation3], 1
    %1463 = vsyncpa [#allocation8], 1
    %1464 = vsyncpa [#allocation4], 1
    %1465 = vsyncpa [#allocation5], 1

</llo_original>
